<compile_context>
chip_gen: v5e
topology: v5e:2x2
jax: 0.10.0
libtpu: 0.0.40
codegen_flags: <defaults>
</compile_context>

<pallas_src>
import functools

import jax
import jax.numpy as jnp
from jax import lax
from jax.experimental import pallas as pl
from jax.experimental.pallas import tpu as pltpu


_INV_SQRT2 = 0.7071067811865476


def _gelu_exact(x):
    # PyTorch nn.GELU() default = exact erf-based GELU (f32 math).
    return 0.5 * x * (1.0 + lax.erf(x * _INV_SQRT2))


def gating_kernel(q_ref, et_ref, rt_ref, st_ref,
                  wq1_ref, bq1_ref, wq2_ref, bq2_ref,
                  w1c_ref, b1c_ref, w2s_ref, b2s_ref,
                  out_ref,
                  *, tb, lq, hp, le, lr, ls, compute_dtype):
    E = q_ref.shape[-1]
    cdt = compute_dtype

    # ---- dense_question MLP on all (tb*Lq) rows at once ----
    q = q_ref[...].reshape(tb * lq, E).astype(cdt)
    hq = jnp.dot(q, wq1_ref[...], preferred_element_type=jnp.float32) + bq1_ref[...]
    dq = jnp.dot(_gelu_exact(hq).astype(cdt), wq2_ref[...],
                 preferred_element_type=jnp.float32) + bq2_ref[...]
    dq = dq.astype(cdt)                      # cast once; reused by all 3 branches

    # ---- question branch: the three siamese first GEMMs fused into one wide-N
    # GEMM, one GELU pass over the question rows ----
    hb = jnp.dot(dq, w1c_ref[...], preferred_element_type=jnp.float32) + b1c_ref[...]
    hb = _gelu_exact(hb)                                      # [tb*Lq, 3*Hp] f32
    # Linearity: mean_j (h_j @ W2 + b2) == (mean_j h_j) @ W2 + b2, so reduce over
    # Lq before the per-branch second GEMM (sublane reduce; GEMM M-dim -> tb).
    h_mean = jnp.mean(hb.reshape(tb, lq, 3 * hp), axis=1).astype(cdt)   # [tb, 3Hp]

    def siamese(idx, tok_ref, row0, ltok):
        lo, hi = idx * hp, (idx + 1) * hp
        w1 = w1c_ref[:, lo:hi]                # [E, Hp]  lane-aligned ref slice
        b1 = b1c_ref[:, lo:hi]                # [1, Hp]  (f32)
        w2 = w2s_ref[idx]                     # [Hp, E]
        b2 = b2s_ref[idx]                     # [1, E]   (f32)

        # Question side: per-branch second GEMM on the Lq-mean of the hidden.
        q_mean = jnp.dot(h_mean[:, lo:hi], w2,
                         preferred_element_type=jnp.float32) + b2       # [tb, E]

        # Token-side MLP.
        tok = tok_ref[...]                                              # [tb,L,E]
        ht = jnp.dot(tok.reshape(tb * ltok, E).astype(cdt), w1,
                     preferred_element_type=jnp.float32) + b1
        rm = jnp.dot(_gelu_exact(ht).astype(cdt), w2,
                     preferred_element_type=jnp.float32) + b2
        rm = rm.reshape(tb, ltok, E)

        # mean-before-dot: mean_j <rm_i, qm_j> == <rm_i, mean_j qm_j>.
        gate = jax.nn.sigmoid(
            jnp.sum(rm * q_mean[:, None, :], axis=-1, keepdims=True))   # [tb,L,1]

        # Gate applied in-kernel; gated tile written into its slot of the fused
        # [tb, Le+Lr+Ls, E] output block (torch.cat folded into the kernel).
        out_ref[:, row0:row0 + ltok, :] = (
            gate * tok.astype(jnp.float32)).astype(out_ref.dtype)

    siamese(0, et_ref, 0, le)
    siamese(1, rt_ref, le, lr)
    siamese(2, st_ref, le + lr, ls)


def _pad_mlp_params(params, hp):
    """Zero-pad the hidden dim to `hp` lanes (exact: padded h=0, gelu(0)=0,
    padded w2 rows are 0)."""
    w1, b1, w2, b2 = params
    pad = hp - w1.shape[1]
    w1 = jnp.pad(w1, ((0, 0), (0, pad)))
    b1 = jnp.pad(b1.reshape(1, -1), ((0, 0), (0, pad)))
    w2 = jnp.pad(w2, ((0, pad), (0, 0)))
    b2 = b2.reshape(1, -1)
    return w1, b1, w2, b2


def _vmem_plan(batch, lq, le, lr, ls, e, hp, w_bytes, out_bytes,
               is_v7x, target_rows):
    """Pick the largest per-step batch tile that fits the per-generation VMEM
    ceiling (sum of double-buffered IO tiles + weights + live f32 activations),
    and an explicit vmem_limit_bytes with headroom."""
    f32 = 4
    ltot = le + lr + ls
    lmax = max(le, lr, ls)
    # Weights/biases (double-buffered by the pipeline even w/ constant index).
    weight_bytes = 2 * (w_bytes * (e * hp + hp * e + e * 3 * hp + 3 * hp * e)
                        + f32 * (hp + e + 3 * hp + 3 * e))
    # Per batch element: double-buffered input/output tiles + live f32 temps.
    io_per = 2 * (f32 * (lq + ltot) * e + out_bytes * ltot * e)
    act_per = f32 * (lq * hp + lq * e + lq * 3 * hp + lmax * hp + 2 * lmax * e)
    per_tb = max(1, io_per + act_per)

    ceiling = (64 << 20) if is_v7x else (128 << 20)
    budget = int(ceiling * 0.7)
    tb_vmem = max(1, (budget - weight_bytes) // per_tb)
    tb_rows = max(1, -(-target_rows // max(lq, lmax)))
    tb_cap = max(1, min(tb_vmem, tb_rows, batch))

    vmem_limit = min(ceiling - (8 << 20),
                     max(32 << 20, weight_bytes + per_tb * tb_cap + (8 << 20)))
    return tb_cap, int(vmem_limit)


def _pick_grid(batch, tb_cap, want_even_steps):
    """Grid-step count / batch tile; pad batch rather than collapsing to tb=1;
    keep an even step count on v7x so both TensorCores stay busy."""
    tb_cap = max(1, min(tb_cap, batch))
    steps = -(-batch // tb_cap)
    if want_even_steps:
        if steps == 1 and batch >= 2:
            steps = 2
        elif steps > 1 and steps % 2 == 1:
            steps += 1
    tb = -(-batch // steps)
    return tb, steps, steps * tb


def _device_config():
    try:
        dev = jax.devices()[0]
        platform = dev.platform
        kind = dev.device_kind.lower()
    except Exception:
        return {"use_bf16": False, "is_v7x": False, "target_rows": 256}
    is_tpu = platform == "tpu"
    is_v7x = "v7" in kind
    is_v5e = ("v5 lite" in kind) or ("v5e" in kind) or ("v5lite" in kind)
    # bf16 MXU inputs pay off on every TPU generation (f32 accumulation kept).
    return {"use_bf16": is_tpu,
            "is_v7x": is_v7x,
            "target_rows": 256 if is_v5e else 512}


@functools.partial(jax.jit, static_argnames=("use_bf16", "is_v7x", "target_rows"))
def gating_forward(question, entity_token, relation_token, subgraph_token,
                   dense_params, entity_params, relation_params, subgraph_params,
                   *, use_bf16=False, is_v7x=False, target_rows=512):
    B, Lq, E = question.shape
    Le = entity_token.shape[1]
    Lr = relation_token.shape[1]
    Ls = subgraph_token.shape[1]
    Ltot = Le + Lr + Ls
    H = dense_params[0].shape[1]
    Hp = ((H + 127) // 128) * 128            # lane-dense hidden dim
    out_dtype = entity_token.dtype

    w_dtype = jnp.bfloat16 if use_bf16 else jnp.float32
    compute_dtype = jnp.bfloat16 if use_bf16 else jnp.float32

    wq1, bq1, wq2, bq2 = _pad_mlp_params(dense_params, Hp)
    pe = _pad_mlp_params(entity_params, Hp)
    pr = _pad_mlp_params(relation_params, Hp)
    ps = _pad_mlp_params(subgraph_params, Hp)

    # GEMM weights pre-cast in the wrapper; biases stay f32.
    wq1 = wq1.astype(w_dtype)
    wq2 = wq2.astype(w_dtype)
    w1c = jnp.concatenate([pe[0], pr[0], ps[0]], axis=1).astype(w_dtype)  # [E,3Hp]
    b1c = jnp.concatenate([pe[1], pr[1], ps[1]], axis=1)                  # [1,3Hp]
    w2s = jnp.stack([pe[2], pr[2], ps[2]]).astype(w_dtype)                # [3,Hp,E]
    b2s = jnp.stack([pe[3], pr[3], ps[3]])                                # [3,1,E]

    tb_cap, vmem_limit = _vmem_plan(
        B, Lq, Le, Lr, Ls, E, Hp,
        w_bytes=2 if use_bf16 else 4,
        out_bytes=jnp.dtype(out_dtype).itemsize,
        is_v7x=is_v7x, target_rows=target_rows)
    tb, steps, Bp = _pick_grid(B, tb_cap, want_even_steps=is_v7x)

    if Bp > B:
        pad = ((0, Bp - B), (0, 0), (0, 0))
        question = jnp.pad(question, pad)
        entity_token = jnp.pad(entity_token, pad)
        relation_token = jnp.pad(relation_token, pad)
        subgraph_token = jnp.pad(subgraph_token, pad)

    kernel = functools.partial(gating_kernel, tb=tb, lq=Lq, hp=Hp,
                               le=Le, lr=Lr, ls=Ls, compute_dtype=compute_dtype)

    # TODO(synk): when E % 128 != 0, present inputs/outputs as 2-D [B, L*E]
    # lane-dense slabs to avoid masked partial stores; kept 3-D here for layout
    # simplicity (real token_dim configs are 128-multiples).
    out = pl.pallas_call(
        kernel,
        out_shape=jax.ShapeDtypeStruct((Bp, Ltot, E), out_dtype),
        grid_spec=pltpu.PrefetchScalarGridSpec(
            num_scalar_prefetch=0,
            grid=(steps,),
            in_specs=[
                pl.BlockSpec((tb, Lq, E), lambda b: (b, 0, 0)),
                pl.BlockSpec((tb, Le, E), lambda b: (b, 0, 0)),
                pl.BlockSpec((tb, Lr, E), lambda b: (b, 0, 0)),
                pl.BlockSpec((tb, Ls, E), lambda b: (b, 0, 0)),
                pl.BlockSpec((E, Hp), lambda b: (0, 0)),
                pl.BlockSpec((1, Hp), lambda b: (0, 0)),
                pl.BlockSpec((Hp, E), lambda b: (0, 0)),
                pl.BlockSpec((1, E), lambda b: (0, 0)),
                pl.BlockSpec((E, 3 * Hp), lambda b: (0, 0)),
                pl.BlockSpec((1, 3 * Hp), lambda b: (0, 0)),
                pl.BlockSpec((3, Hp, E), lambda b: (0, 0, 0)),
                pl.BlockSpec((3, 1, E), lambda b: (0, 0, 0)),
            ],
            out_specs=pl.BlockSpec((tb, Ltot, E), lambda b: (b, 0, 0)),
        ),
        compiler_params=pltpu.CompilerParams(
            dimension_semantics=("parallel",),
            vmem_limit_bytes=vmem_limit,
        ),
    )(question, entity_token, relation_token, subgraph_token,
      wq1, bq1, wq2, bq2, w1c, b1c, w2s, b2s)

    if Bp > B:
        out = out[:B]
    return out


def reference_forward(question, entity_token, relation_token, subgraph_token,
                      dense_params, entity_params, relation_params,
                      subgraph_params):
    def mlp(x, p):
        w1, b1, w2, b2 = p
        h = x @ w1 + b1
        h = 0.5 * h * (1.0 + lax.erf(h * _INV_SQRT2))
        return h @ w2 + b2

    dq = mlp(question, dense_params)

    def siamese(tok, p):
        qm = mlp(dq, p)
        rm = mlp(tok, p)
        simi = jnp.einsum("bld,bqd->blq", rm, qm)
        simi = jnp.mean(simi, axis=-1, keepdims=True)
        return jax.nn.sigmoid(simi)

    ge = siamese(entity_token, entity_params)
    gr = siamese(relation_token, relation_params)
    gs = siamese(subgraph_token, subgraph_params)
    return jnp.concatenate(
        [ge * entity_token, gr * relation_token, gs * subgraph_token], axis=1)


if __name__ == "__main__":
    B, Lq, Lt, E = 2, 8, 8, 32
    H = E // 2

    key = jax.random.PRNGKey(0)
    keys = jax.random.split(key, 8)

    question = jax.random.normal(keys[0], (B, Lq, E), dtype=jnp.float32)
    entity_token = jax.random.normal(keys[1], (B, Lt, E), dtype=jnp.float32)
    relation_token = jax.random.normal(keys[2], (B, Lt, E), dtype=jnp.float32)
    subgraph_token = jax.random.normal(keys[3], (B, Lt, E), dtype=jnp.float32)

    def init_mlp(k):
        k1, k2, k3, k4 = jax.random.split(k, 4)
        # PyTorch Linear weights stored transposed: x @ W layout.
        w1 = jax.random.normal(k1, (E, H), dtype=jnp.float32) * 0.1
        b1 = jax.random.normal(k2, (H,), dtype=jnp.float32) * 0.1
        w2 = jax.random.normal(k3, (H, E), dtype=jnp.float32) * 0.1
        b2 = jax.random.normal(k4, (E,), dtype=jnp.float32) * 0.1
        return w1, b1, w2, b2

    dense_params = init_mlp(keys[4])
    entity_params = init_mlp(keys[5])
    relation_params = init_mlp(keys[6])
    subgraph_params = init_mlp(keys[7])

    cfg = _device_config()

    out = gating_forward(question, entity_token, relation_token, subgraph_token,
                         dense_params, entity_params, relation_params,
                         subgraph_params, use_bf16=cfg["use_bf16"],
                         is_v7x=cfg["is_v7x"], target_rows=cfg["target_rows"])
    jax.block_until_ready(out)

    ref = reference_forward(question, entity_token, relation_token,
                            subgraph_token, dense_params, entity_params,
                            relation_params, subgraph_params)

    assert out.shape == (B, 3 * Lt, E), out.shape
    # f32 path: only reassociations (mean-first, linearity) + zero-padding
    # -> ~1e-6 diffs. bf16 GEMM-input path: ~1e-3-level wobble on gate logits
    # (accepted; sigmoid output diffs well under 3e-2).
    tol = 3e-2 if cfg["use_bf16"] else 1e-4
    max_err = float(jnp.max(jnp.abs(out - ref)))
    assert jnp.allclose(out, ref, atol=tol, rtol=tol), max_err

    print("KERNEL_OK")
</pallas_src>

<mosaic_0001>
module attributes {stable_mosaic.version = 11 : i64} {
  func.func @gating_kernel(%arg0: i32, %arg1: memref<2x8x32xf32, #tpu.memory_space<vmem>>, %arg2: memref<2x8x32xf32, #tpu.memory_space<vmem>>, %arg3: memref<2x8x32xf32, #tpu.memory_space<vmem>>, %arg4: memref<2x8x32xf32, #tpu.memory_space<vmem>>, %arg5: memref<32x128xf32, #tpu.memory_space<vmem>>, %arg6: memref<1x128xf32, #tpu.memory_space<vmem>>, %arg7: memref<128x32xf32, #tpu.memory_space<vmem>>, %arg8: memref<1x32xf32, #tpu.memory_space<vmem>>, %arg9: memref<32x384xf32, #tpu.memory_space<vmem>>, %arg10: memref<1x384xf32, #tpu.memory_space<vmem>>, %arg11: memref<3x128x32xf32, #tpu.memory_space<vmem>>, %arg12: memref<3x1x32xf32, #tpu.memory_space<vmem>>, %arg13: memref<2x24x32xf32, #tpu.memory_space<vmem>>) attributes {dimension_semantics = [#tpu.dimension_semantics<parallel>], iteration_bounds = array<i64: 1>, scalar_prefetch = 0 : i64, scratch_operands = 0 : i64, tpu.core_type = #tpu.core_type<tc>, window_params = [{transform_indices = @transform_0, window_bounds = array<i64: 2, 8, 32>}, {transform_indices = @transform_1, window_bounds = array<i64: 2, 8, 32>}, {transform_indices = @transform_2, window_bounds = array<i64: 2, 8, 32>}, {transform_indices = @transform_3, window_bounds = array<i64: 2, 8, 32>}, {pipeline_mode = #tpu.pipeline_mode<synchronous>, transform_indices = @transform_4, window_bounds = array<i64: 32, 128>}, {pipeline_mode = #tpu.pipeline_mode<synchronous>, transform_indices = @transform_5, window_bounds = array<i64: 1, 128>}, {pipeline_mode = #tpu.pipeline_mode<synchronous>, transform_indices = @transform_6, window_bounds = array<i64: 128, 32>}, {pipeline_mode = #tpu.pipeline_mode<synchronous>, transform_indices = @transform_7, window_bounds = array<i64: 1, 32>}, {pipeline_mode = #tpu.pipeline_mode<synchronous>, transform_indices = @transform_8, window_bounds = array<i64: 32, 384>}, {pipeline_mode = #tpu.pipeline_mode<synchronous>, transform_indices = @transform_9, window_bounds = array<i64: 1, 384>}, {pipeline_mode = #tpu.pipeline_mode<synchronous>, transform_indices = @transform_10, window_bounds = array<i64: 3, 128, 32>}, {pipeline_mode = #tpu.pipeline_mode<synchronous>, transform_indices = @transform_11, window_bounds = array<i64: 3, 1, 32>}, {transform_indices = @transform_12, window_bounds = array<i64: 2, 24, 32>}]} {
    %c0 = arith.constant 0 : index
    %c0_0 = arith.constant 0 : index
    %c0_1 = arith.constant 0 : index
    %0 = vector.load %arg1[%c0, %c0_0, %c0_1] : memref<2x8x32xf32, #tpu.memory_space<vmem>>, vector<2x8x32xf32>
    %1 = vector.shape_cast %0 : vector<2x8x32xf32> to vector<16x32xf32>
    %c0_2 = arith.constant 0 : index
    %c0_3 = arith.constant 0 : index
    %2 = vector.load %arg5[%c0_2, %c0_3] : memref<32x128xf32, #tpu.memory_space<vmem>>, vector<32x128xf32>
    %cst = arith.constant dense<0.000000e+00> : vector<16x128xf32>
    %3 = tpu.matmul %1, %2, %cst {dimension_numbers = #tpu.dot_dimension_numbers<[1], [0], [0], [1], [0, 0, 1, 1], [], []>} : vector<16x32xf32>, vector<32x128xf32>, vector<16x128xf32> -> vector<16x128xf32>
    %c0_4 = arith.constant 0 : index
    %c0_5 = arith.constant 0 : index
    %4 = vector.load %arg6[%c0_4, %c0_5] : memref<1x128xf32, #tpu.memory_space<vmem>>, vector<1x128xf32>
    %5 = vector.broadcast %4 : vector<1x128xf32> to vector<16x128xf32>
    %6 = arith.addf %3, %5 : vector<16x128xf32>
    %cst_6 = arith.constant 5.000000e-01 : f32
    %7 = vector.broadcast %cst_6 : f32 to vector<16x128xf32>
    %8 = arith.mulf %7, %6 : vector<16x128xf32>
    %cst_7 = arith.constant 0.707106769 : f32
    %9 = vector.broadcast %cst_7 : f32 to vector<16x128xf32>
    %10 = arith.mulf %6, %9 : vector<16x128xf32>
    %11 = math.erf %10 : vector<16x128xf32>
    %cst_8 = arith.constant 1.000000e+00 : f32
    %12 = vector.broadcast %cst_8 : f32 to vector<16x128xf32>
    %13 = arith.addf %12, %11 : vector<16x128xf32>
    %14 = arith.mulf %8, %13 : vector<16x128xf32>
    %c0_9 = arith.constant 0 : index
    %c0_10 = arith.constant 0 : index
    %15 = vector.load %arg7[%c0_9, %c0_10] : memref<128x32xf32, #tpu.memory_space<vmem>>, vector<128x32xf32>
    %cst_11 = arith.constant dense<0.000000e+00> : vector<16x32xf32>
    %16 = tpu.matmul %14, %15, %cst_11 {dimension_numbers = #tpu.dot_dimension_numbers<[1], [0], [0], [1], [0, 0, 1, 1], [], []>} : vector<16x128xf32>, vector<128x32xf32>, vector<16x32xf32> -> vector<16x32xf32>
    %c0_12 = arith.constant 0 : index
    %c0_13 = arith.constant 0 : index
    %17 = vector.load %arg8[%c0_12, %c0_13] : memref<1x32xf32, #tpu.memory_space<vmem>>, vector<1x32xf32>
    %18 = vector.broadcast %17 : vector<1x32xf32> to vector<16x32xf32>
    %19 = arith.addf %16, %18 : vector<16x32xf32>
    %c0_14 = arith.constant 0 : index
    %c0_15 = arith.constant 0 : index
    %20 = vector.load %arg9[%c0_14, %c0_15] : memref<32x384xf32, #tpu.memory_space<vmem>>, vector<32x384xf32>
    %cst_16 = arith.constant dense<0.000000e+00> : vector<16x384xf32>
    %21 = tpu.matmul %19, %20, %cst_16 {dimension_numbers = #tpu.dot_dimension_numbers<[1], [0], [0], [1], [0, 0, 1, 1], [], []>} : vector<16x32xf32>, vector<32x384xf32>, vector<16x384xf32> -> vector<16x384xf32>
    %c0_17 = arith.constant 0 : index
    %c0_18 = arith.constant 0 : index
    %22 = vector.load %arg10[%c0_17, %c0_18] : memref<1x384xf32, #tpu.memory_space<vmem>>, vector<1x384xf32>
    %23 = vector.broadcast %22 : vector<1x384xf32> to vector<16x384xf32>
    %24 = arith.addf %21, %23 : vector<16x384xf32>
    %cst_19 = arith.constant 5.000000e-01 : f32
    %25 = vector.broadcast %cst_19 : f32 to vector<16x384xf32>
    %26 = arith.mulf %25, %24 : vector<16x384xf32>
    %cst_20 = arith.constant 0.707106769 : f32
    %27 = vector.broadcast %cst_20 : f32 to vector<16x384xf32>
    %28 = arith.mulf %24, %27 : vector<16x384xf32>
    %29 = math.erf %28 : vector<16x384xf32>
    %cst_21 = arith.constant 1.000000e+00 : f32
    %30 = vector.broadcast %cst_21 : f32 to vector<16x384xf32>
    %31 = arith.addf %30, %29 : vector<16x384xf32>
    %32 = arith.mulf %26, %31 : vector<16x384xf32>
    %33 = vector.shape_cast %32 : vector<16x384xf32> to vector<2x8x384xf32>
    %cst_22 = arith.constant dense<0.000000e+00> : vector<2x384xf32>
    %34 = vector.multi_reduction <add>, %33, %cst_22 [1] : vector<2x8x384xf32> to vector<2x384xf32>
    %cst_23 = arith.constant 8.000000e+00 : f32
    %35 = vector.broadcast %cst_23 : f32 to vector<2x384xf32>
    %36 = arith.divf %34, %35 : vector<2x384xf32>
    %c0_24 = arith.constant 0 : index
    %c0_25 = arith.constant 0 : index
    %37 = vector.load %arg9[%c0_24, %c0_25] : memref<32x384xf32, #tpu.memory_space<vmem>>, vector<32x128xf32>
    %c0_26 = arith.constant 0 : index
    %c0_27 = arith.constant 0 : index
    %38 = vector.load %arg10[%c0_26, %c0_27] : memref<1x384xf32, #tpu.memory_space<vmem>>, vector<1x128xf32>
    %c0_28 = arith.constant 0 : index
    %c0_29 = arith.constant 0 : index
    %c0_30 = arith.constant 0 : index
    %39 = vector.load %arg11[%c0_28, %c0_29, %c0_30] : memref<3x128x32xf32, #tpu.memory_space<vmem>>, vector<1x128x32xf32>
    %40 = vector.shape_cast %39 : vector<1x128x32xf32> to vector<128x32xf32>
    %c0_31 = arith.constant 0 : index
    %c0_32 = arith.constant 0 : index
    %c0_33 = arith.constant 0 : index
    %41 = vector.load %arg12[%c0_31, %c0_32, %c0_33] : memref<3x1x32xf32, #tpu.memory_space<vmem>>, vector<1x1x32xf32>
    %42 = vector.shape_cast %41 : vector<1x1x32xf32> to vector<1x32xf32>
    %43 = vector.extract_strided_slice %36 {offsets = [0, 0], sizes = [2, 128], strides = [1, 1]} : vector<2x384xf32> to vector<2x128xf32>
    %cst_34 = arith.constant dense<0.000000e+00> : vector<2x32xf32>
    %44 = tpu.matmul %43, %40, %cst_34 {dimension_numbers = #tpu.dot_dimension_numbers<[1], [0], [0], [1], [0, 0, 1, 1], [], []>} : vector<2x128xf32>, vector<128x32xf32>, vector<2x32xf32> -> vector<2x32xf32>
    %45 = vector.broadcast %42 : vector<1x32xf32> to vector<2x32xf32>
    %46 = arith.addf %44, %45 : vector<2x32xf32>
    %c0_35 = arith.constant 0 : index
    %c0_36 = arith.constant 0 : index
    %c0_37 = arith.constant 0 : index
    %47 = vector.load %arg2[%c0_35, %c0_36, %c0_37] : memref<2x8x32xf32, #tpu.memory_space<vmem>>, vector<2x8x32xf32>
    %48 = vector.shape_cast %47 : vector<2x8x32xf32> to vector<16x32xf32>
    %cst_38 = arith.constant dense<0.000000e+00> : vector<16x128xf32>
    %49 = tpu.matmul %48, %37, %cst_38 {dimension_numbers = #tpu.dot_dimension_numbers<[1], [0], [0], [1], [0, 0, 1, 1], [], []>} : vector<16x32xf32>, vector<32x128xf32>, vector<16x128xf32> -> vector<16x128xf32>
    %50 = vector.broadcast %38 : vector<1x128xf32> to vector<16x128xf32>
    %51 = arith.addf %49, %50 : vector<16x128xf32>
    %cst_39 = arith.constant 5.000000e-01 : f32
    %52 = vector.broadcast %cst_39 : f32 to vector<16x128xf32>
    %53 = arith.mulf %52, %51 : vector<16x128xf32>
    %cst_40 = arith.constant 0.707106769 : f32
    %54 = vector.broadcast %cst_40 : f32 to vector<16x128xf32>
    %55 = arith.mulf %51, %54 : vector<16x128xf32>
    %56 = math.erf %55 : vector<16x128xf32>
    %cst_41 = arith.constant 1.000000e+00 : f32
    %57 = vector.broadcast %cst_41 : f32 to vector<16x128xf32>
    %58 = arith.addf %57, %56 : vector<16x128xf32>
    %59 = arith.mulf %53, %58 : vector<16x128xf32>
    %cst_42 = arith.constant dense<0.000000e+00> : vector<16x32xf32>
    %60 = tpu.matmul %59, %40, %cst_42 {dimension_numbers = #tpu.dot_dimension_numbers<[1], [0], [0], [1], [0, 0, 1, 1], [], []>} : vector<16x128xf32>, vector<128x32xf32>, vector<16x32xf32> -> vector<16x32xf32>
    %61 = vector.broadcast %42 : vector<1x32xf32> to vector<16x32xf32>
    %62 = arith.addf %60, %61 : vector<16x32xf32>
    %63 = vector.shape_cast %62 : vector<16x32xf32> to vector<2x8x32xf32>
    %64 = vector.shape_cast %46 : vector<2x32xf32> to vector<2x1x32xf32>
    %65 = vector.broadcast %64 : vector<2x1x32xf32> to vector<2x8x32xf32>
    %66 = arith.mulf %63, %65 : vector<2x8x32xf32>
    %cst_43 = arith.constant dense<0.000000e+00> : vector<2x8xf32>
    %67 = vector.multi_reduction <add>, %66, %cst_43 [2] : vector<2x8x32xf32> to vector<2x8xf32>
    %68 = vector.shape_cast %67 : vector<2x8xf32> to vector<2x8x1xf32>
    %69 = arith.negf %68 : vector<2x8x1xf32>
    %70 = math.exp %69 : vector<2x8x1xf32>
    %cst_44 = arith.constant 1.000000e+00 : f32
    %71 = vector.broadcast %cst_44 : f32 to vector<2x8x1xf32>
    %72 = arith.addf %71, %70 : vector<2x8x1xf32>
    %73 = arith.divf %71, %72 : vector<2x8x1xf32>
    %74 = vector.broadcast %73 : vector<2x8x1xf32> to vector<2x8x32xf32>
    %75 = arith.mulf %74, %47 : vector<2x8x32xf32>
    %c0_45 = arith.constant 0 : index
    %c0_46 = arith.constant 0 : index
    %c0_47 = arith.constant 0 : index
    %76 = vector.load %arg13[%c0_45, %c0_46, %c0_47] : memref<2x24x32xf32, #tpu.memory_space<vmem>>, vector<2x8x32xf32>
    tpu.vector_store %arg13[%c0_45, %c0_46, %c0_47], %75 {strides = array<i32>} : memref<2x24x32xf32, #tpu.memory_space<vmem>>, vector<2x8x32xf32>,
    %c0_48 = arith.constant 0 : index
    %c128 = arith.constant 128 : index
    %77 = vector.load %arg9[%c0_48, %c128] : memref<32x384xf32, #tpu.memory_space<vmem>>, vector<32x128xf32>
    %c0_49 = arith.constant 0 : index
    %c128_50 = arith.constant 128 : index
    %78 = vector.load %arg10[%c0_49, %c128_50] : memref<1x384xf32, #tpu.memory_space<vmem>>, vector<1x128xf32>
    %c1 = arith.constant 1 : index
    %c0_51 = arith.constant 0 : index
    %c0_52 = arith.constant 0 : index
    %79 = vector.load %arg11[%c1, %c0_51, %c0_52] : memref<3x128x32xf32, #tpu.memory_space<vmem>>, vector<1x128x32xf32>
    %80 = vector.shape_cast %79 : vector<1x128x32xf32> to vector<128x32xf32>
    %c1_53 = arith.constant 1 : index
    %c0_54 = arith.constant 0 : index
    %c0_55 = arith.constant 0 : index
    %81 = vector.load %arg12[%c1_53, %c0_54, %c0_55] : memref<3x1x32xf32, #tpu.memory_space<vmem>>, vector<1x1x32xf32>
    %82 = vector.shape_cast %81 : vector<1x1x32xf32> to vector<1x32xf32>
    %83 = vector.extract_strided_slice %36 {offsets = [0, 128], sizes = [2, 128], strides = [1, 1]} : vector<2x384xf32> to vector<2x128xf32>
    %cst_56 = arith.constant dense<0.000000e+00> : vector<2x32xf32>
    %84 = tpu.matmul %83, %80, %cst_56 {dimension_numbers = #tpu.dot_dimension_numbers<[1], [0], [0], [1], [0, 0, 1, 1], [], []>} : vector<2x128xf32>, vector<128x32xf32>, vector<2x32xf32> -> vector<2x32xf32>
    %85 = vector.broadcast %82 : vector<1x32xf32> to vector<2x32xf32>
    %86 = arith.addf %84, %85 : vector<2x32xf32>
    %c0_57 = arith.constant 0 : index
    %c0_58 = arith.constant 0 : index
    %c0_59 = arith.constant 0 : index
    %87 = vector.load %arg3[%c0_57, %c0_58, %c0_59] : memref<2x8x32xf32, #tpu.memory_space<vmem>>, vector<2x8x32xf32>
    %88 = vector.shape_cast %87 : vector<2x8x32xf32> to vector<16x32xf32>
    %cst_60 = arith.constant dense<0.000000e+00> : vector<16x128xf32>
    %89 = tpu.matmul %88, %77, %cst_60 {dimension_numbers = #tpu.dot_dimension_numbers<[1], [0], [0], [1], [0, 0, 1, 1], [], []>} : vector<16x32xf32>, vector<32x128xf32>, vector<16x128xf32> -> vector<16x128xf32>
    %90 = vector.broadcast %78 : vector<1x128xf32> to vector<16x128xf32>
    %91 = arith.addf %89, %90 : vector<16x128xf32>
    %cst_61 = arith.constant 5.000000e-01 : f32
    %92 = vector.broadcast %cst_61 : f32 to vector<16x128xf32>
    %93 = arith.mulf %92, %91 : vector<16x128xf32>
    %cst_62 = arith.constant 0.707106769 : f32
    %94 = vector.broadcast %cst_62 : f32 to vector<16x128xf32>
    %95 = arith.mulf %91, %94 : vector<16x128xf32>
    %96 = math.erf %95 : vector<16x128xf32>
    %cst_63 = arith.constant 1.000000e+00 : f32
    %97 = vector.broadcast %cst_63 : f32 to vector<16x128xf32>
    %98 = arith.addf %97, %96 : vector<16x128xf32>
    %99 = arith.mulf %93, %98 : vector<16x128xf32>
    %cst_64 = arith.constant dense<0.000000e+00> : vector<16x32xf32>
    %100 = tpu.matmul %99, %80, %cst_64 {dimension_numbers = #tpu.dot_dimension_numbers<[1], [0], [0], [1], [0, 0, 1, 1], [], []>} : vector<16x128xf32>, vector<128x32xf32>, vector<16x32xf32> -> vector<16x32xf32>
    %101 = vector.broadcast %82 : vector<1x32xf32> to vector<16x32xf32>
    %102 = arith.addf %100, %101 : vector<16x32xf32>
    %103 = vector.shape_cast %102 : vector<16x32xf32> to vector<2x8x32xf32>
    %104 = vector.shape_cast %86 : vector<2x32xf32> to vector<2x1x32xf32>
    %105 = vector.broadcast %104 : vector<2x1x32xf32> to vector<2x8x32xf32>
    %106 = arith.mulf %103, %105 : vector<2x8x32xf32>
    %cst_65 = arith.constant dense<0.000000e+00> : vector<2x8xf32>
    %107 = vector.multi_reduction <add>, %106, %cst_65 [2] : vector<2x8x32xf32> to vector<2x8xf32>
    %108 = vector.shape_cast %107 : vector<2x8xf32> to vector<2x8x1xf32>
    %109 = arith.negf %108 : vector<2x8x1xf32>
    %110 = math.exp %109 : vector<2x8x1xf32>
    %cst_66 = arith.constant 1.000000e+00 : f32
    %111 = vector.broadcast %cst_66 : f32 to vector<2x8x1xf32>
    %112 = arith.addf %111, %110 : vector<2x8x1xf32>
    %113 = arith.divf %111, %112 : vector<2x8x1xf32>
    %114 = vector.broadcast %113 : vector<2x8x1xf32> to vector<2x8x32xf32>
    %115 = arith.mulf %114, %87 : vector<2x8x32xf32>
    %c0_67 = arith.constant 0 : index
    %c8 = arith.constant 8 : index
    %c0_68 = arith.constant 0 : index
    %116 = vector.load %arg13[%c0_67, %c8, %c0_68] : memref<2x24x32xf32, #tpu.memory_space<vmem>>, vector<2x8x32xf32>
    tpu.vector_store %arg13[%c0_67, %c8, %c0_68], %115 {strides = array<i32>} : memref<2x24x32xf32, #tpu.memory_space<vmem>>, vector<2x8x32xf32>,
    %c0_69 = arith.constant 0 : index
    %c256 = arith.constant 256 : index
    %117 = vector.load %arg9[%c0_69, %c256] : memref<32x384xf32, #tpu.memory_space<vmem>>, vector<32x128xf32>
    %c0_70 = arith.constant 0 : index
    %c256_71 = arith.constant 256 : index
    %118 = vector.load %arg10[%c0_70, %c256_71] : memref<1x384xf32, #tpu.memory_space<vmem>>, vector<1x128xf32>
    %c2 = arith.constant 2 : index
    %c0_72 = arith.constant 0 : index
    %c0_73 = arith.constant 0 : index
    %119 = vector.load %arg11[%c2, %c0_72, %c0_73] : memref<3x128x32xf32, #tpu.memory_space<vmem>>, vector<1x128x32xf32>
    %120 = vector.shape_cast %119 : vector<1x128x32xf32> to vector<128x32xf32>
    %c2_74 = arith.constant 2 : index
    %c0_75 = arith.constant 0 : index
    %c0_76 = arith.constant 0 : index
    %121 = vector.load %arg12[%c2_74, %c0_75, %c0_76] : memref<3x1x32xf32, #tpu.memory_space<vmem>>, vector<1x1x32xf32>
    %122 = vector.shape_cast %121 : vector<1x1x32xf32> to vector<1x32xf32>
    %123 = vector.extract_strided_slice %36 {offsets = [0, 256], sizes = [2, 128], strides = [1, 1]} : vector<2x384xf32> to vector<2x128xf32>
    %cst_77 = arith.constant dense<0.000000e+00> : vector<2x32xf32>
    %124 = tpu.matmul %123, %120, %cst_77 {dimension_numbers = #tpu.dot_dimension_numbers<[1], [0], [0], [1], [0, 0, 1, 1], [], []>} : vector<2x128xf32>, vector<128x32xf32>, vector<2x32xf32> -> vector<2x32xf32>
    %125 = vector.broadcast %122 : vector<1x32xf32> to vector<2x32xf32>
    %126 = arith.addf %124, %125 : vector<2x32xf32>
    %c0_78 = arith.constant 0 : index
    %c0_79 = arith.constant 0 : index
    %c0_80 = arith.constant 0 : index
    %127 = vector.load %arg4[%c0_78, %c0_79, %c0_80] : memref<2x8x32xf32, #tpu.memory_space<vmem>>, vector<2x8x32xf32>
    %128 = vector.shape_cast %127 : vector<2x8x32xf32> to vector<16x32xf32>
    %cst_81 = arith.constant dense<0.000000e+00> : vector<16x128xf32>
    %129 = tpu.matmul %128, %117, %cst_81 {dimension_numbers = #tpu.dot_dimension_numbers<[1], [0], [0], [1], [0, 0, 1, 1], [], []>} : vector<16x32xf32>, vector<32x128xf32>, vector<16x128xf32> -> vector<16x128xf32>
    %130 = vector.broadcast %118 : vector<1x128xf32> to vector<16x128xf32>
    %131 = arith.addf %129, %130 : vector<16x128xf32>
    %cst_82 = arith.constant 5.000000e-01 : f32
    %132 = vector.broadcast %cst_82 : f32 to vector<16x128xf32>
    %133 = arith.mulf %132, %131 : vector<16x128xf32>
    %cst_83 = arith.constant 0.707106769 : f32
    %134 = vector.broadcast %cst_83 : f32 to vector<16x128xf32>
    %135 = arith.mulf %131, %134 : vector<16x128xf32>
    %136 = math.erf %135 : vector<16x128xf32>
    %cst_84 = arith.constant 1.000000e+00 : f32
    %137 = vector.broadcast %cst_84 : f32 to vector<16x128xf32>
    %138 = arith.addf %137, %136 : vector<16x128xf32>
    %139 = arith.mulf %133, %138 : vector<16x128xf32>
    %cst_85 = arith.constant dense<0.000000e+00> : vector<16x32xf32>
    %140 = tpu.matmul %139, %120, %cst_85 {dimension_numbers = #tpu.dot_dimension_numbers<[1], [0], [0], [1], [0, 0, 1, 1], [], []>} : vector<16x128xf32>, vector<128x32xf32>, vector<16x32xf32> -> vector<16x32xf32>
    %141 = vector.broadcast %122 : vector<1x32xf32> to vector<16x32xf32>
    %142 = arith.addf %140, %141 : vector<16x32xf32>
    %143 = vector.shape_cast %142 : vector<16x32xf32> to vector<2x8x32xf32>
    %144 = vector.shape_cast %126 : vector<2x32xf32> to vector<2x1x32xf32>
    %145 = vector.broadcast %144 : vector<2x1x32xf32> to vector<2x8x32xf32>
    %146 = arith.mulf %143, %145 : vector<2x8x32xf32>
    %cst_86 = arith.constant dense<0.000000e+00> : vector<2x8xf32>
    %147 = vector.multi_reduction <add>, %146, %cst_86 [2] : vector<2x8x32xf32> to vector<2x8xf32>
    %148 = vector.shape_cast %147 : vector<2x8xf32> to vector<2x8x1xf32>
    %149 = arith.negf %148 : vector<2x8x1xf32>
    %150 = math.exp %149 : vector<2x8x1xf32>
    %cst_87 = arith.constant 1.000000e+00 : f32
    %151 = vector.broadcast %cst_87 : f32 to vector<2x8x1xf32>
    %152 = arith.addf %151, %150 : vector<2x8x1xf32>
    %153 = arith.divf %151, %152 : vector<2x8x1xf32>
    %154 = vector.broadcast %153 : vector<2x8x1xf32> to vector<2x8x32xf32>
    %155 = arith.mulf %154, %127 : vector<2x8x32xf32>
    %c0_88 = arith.constant 0 : index
    %c16 = arith.constant 16 : index
    %c0_89 = arith.constant 0 : index
    %156 = vector.load %arg13[%c0_88, %c16, %c0_89] : memref<2x24x32xf32, #tpu.memory_space<vmem>>, vector<2x8x32xf32>
    tpu.vector_store %arg13[%c0_88, %c16, %c0_89], %155 {strides = array<i32>} : memref<2x24x32xf32, #tpu.memory_space<vmem>>, vector<2x8x32xf32>,
    return
  }
  func.func @transform_0(%arg0: i32) -> (i32, i32, i32) {
    %c0_i32 = arith.constant 0 : i32
    %c0_i32_0 = arith.constant 0 : i32
    %c0_i32_1 = arith.constant 0 : i32
    return %arg0, %c0_i32, %c0_i32_0 : i32, i32, i32
  }
  func.func @transform_1(%arg0: i32) -> (i32, i32, i32) {
    %c0_i32 = arith.constant 0 : i32
    %c0_i32_0 = arith.constant 0 : i32
    %c0_i32_1 = arith.constant 0 : i32
    return %arg0, %c0_i32, %c0_i32_0 : i32, i32, i32
  }
  func.func @transform_2(%arg0: i32) -> (i32, i32, i32) {
    %c0_i32 = arith.constant 0 : i32
    %c0_i32_0 = arith.constant 0 : i32
    %c0_i32_1 = arith.constant 0 : i32
    return %arg0, %c0_i32, %c0_i32_0 : i32, i32, i32
  }
  func.func @transform_3(%arg0: i32) -> (i32, i32, i32) {
    %c0_i32 = arith.constant 0 : i32
    %c0_i32_0 = arith.constant 0 : i32
    %c0_i32_1 = arith.constant 0 : i32
    return %arg0, %c0_i32, %c0_i32_0 : i32, i32, i32
  }
  func.func @transform_4(%arg0: i32) -> (i32, i32) {
    %c0_i32 = arith.constant 0 : i32
    %c0_i32_0 = arith.constant 0 : i32
    %c0_i32_1 = arith.constant 0 : i32
    return %c0_i32, %c0_i32_0 : i32, i32
  }
  func.func @transform_5(%arg0: i32) -> (i32, i32) {
    %c0_i32 = arith.constant 0 : i32
    %c0_i32_0 = arith.constant 0 : i32
    %c0_i32_1 = arith.constant 0 : i32
    return %c0_i32, %c0_i32_0 : i32, i32
  }
  func.func @transform_6(%arg0: i32) -> (i32, i32) {
    %c0_i32 = arith.constant 0 : i32
    %c0_i32_0 = arith.constant 0 : i32
    %c0_i32_1 = arith.constant 0 : i32
    return %c0_i32, %c0_i32_0 : i32, i32
  }
  func.func @transform_7(%arg0: i32) -> (i32, i32) {
    %c0_i32 = arith.constant 0 : i32
    %c0_i32_0 = arith.constant 0 : i32
    %c0_i32_1 = arith.constant 0 : i32
    return %c0_i32, %c0_i32_0 : i32, i32
  }
  func.func @transform_8(%arg0: i32) -> (i32, i32) {
    %c0_i32 = arith.constant 0 : i32
    %c0_i32_0 = arith.constant 0 : i32
    %c0_i32_1 = arith.constant 0 : i32
    return %c0_i32, %c0_i32_0 : i32, i32
  }
  func.func @transform_9(%arg0: i32) -> (i32, i32) {
    %c0_i32 = arith.constant 0 : i32
    %c0_i32_0 = arith.constant 0 : i32
    %c0_i32_1 = arith.constant 0 : i32
    return %c0_i32, %c0_i32_0 : i32, i32
  }
  func.func @transform_10(%arg0: i32) -> (i32, i32, i32) {
    %c0_i32 = arith.constant 0 : i32
    %c0_i32_0 = arith.constant 0 : i32
    %c0_i32_1 = arith.constant 0 : i32
    %c0_i32_2 = arith.constant 0 : i32
    return %c0_i32, %c0_i32_0, %c0_i32_1 : i32, i32, i32
  }
  func.func @transform_11(%arg0: i32) -> (i32, i32, i32) {
    %c0_i32 = arith.constant 0 : i32
    %c0_i32_0 = arith.constant 0 : i32
    %c0_i32_1 = arith.constant 0 : i32
    %c0_i32_2 = arith.constant 0 : i32
    return %c0_i32, %c0_i32_0, %c0_i32_1 : i32, i32, i32
  }
  func.func @transform_12(%arg0: i32) -> (i32, i32, i32) {
    %c0_i32 = arith.constant 0 : i32
    %c0_i32_0 = arith.constant 0 : i32
    %c0_i32_1 = arith.constant 0 : i32
    return %arg0, %c0_i32, %c0_i32_0 : i32, i32, i32
  }
}

</mosaic_0001>

<llo_original>
// kernel: gating_forward.1
$region0: #{gating_forward.1}
  #allocation0 [shape = 'u32[]', space=smem, size = 0x4, offset = 0x4, fixed_abs, tag = 'smem constant byte address 0x4 - core index']
  #allocation1 [shape = 'u32[72,128]{1,0:T(1,128)}', space=vmem, size = 0x9000, scoped, tag = 'internal scratch']
  %s0 = inlined_call_operand.vmem [shape: f32[2,8,32], index: 0, kind: input, shape index: {}]
  %s1 = inlined_call_operand.vmem [shape: f32[2,8,32], index: 1, kind: input, shape index: {}]
  %s2 = inlined_call_operand.vmem [shape: f32[2,8,32], index: 2, kind: input, shape index: {}]
  %s3 = inlined_call_operand.vmem [shape: f32[2,8,32], index: 3, kind: input, shape index: {}]
  %s4 = inlined_call_operand.vmem [shape: f32[32,128], index: 4, kind: input, shape index: {}]
  %s5 = inlined_call_operand.vmem [shape: f32[1,128], index: 5, kind: input, shape index: {}]
  %s6 = inlined_call_operand.vmem [shape: f32[128,32], index: 6, kind: input, shape index: {}]
  %s7 = inlined_call_operand.vmem [shape: f32[1,32], index: 7, kind: input, shape index: {}]
  %s8 = inlined_call_operand.vmem [shape: f32[32,384], index: 8, kind: input, shape index: {}]
  %s9 = inlined_call_operand.vmem [shape: f32[1,384], index: 9, kind: input, shape index: {}]
  %s10 = inlined_call_operand.vmem [shape: f32[3,128,32], index: 10, kind: input, shape index: {}]
  %s11 = inlined_call_operand.vmem [shape: f32[3,1,32], index: 11, kind: input, shape index: {}]
  %s12 = inlined_call_operand.hbm [shape: f32[2,24,32], index: 12, kind: output, shape index: {}]
  %s13 = sld [smem:[#allocation0]]
  $region58: #{gating_forward.1} parent=0
    _
  %s15 = ssub.s32 1, %s13
  %s16 = scalar_select 0, %s15, %s13
  $region1: #{gating_forward.1} parent=0
    #allocation2 [shape = 'u8[24576]{0}', space=vmem, size = 0x6000, scoped, tag = 'output window, operand 0, single buffered']
    #allocation3 [shape = 's32[1]{0}', space=sflag, size = 0x4, scoped, tag = 'scoped memory for gating_forward.1']
    %17 = vsyncpa [#allocation3], 0
    // Predicated region
    $region2: #{gating_forward.1} parent=1 // pred_check
      _
    $region3: #{gating_forward.1} parent=1 // pred_check_branch
      %19 = sbr.rel (0) target = $region5
    $region4: #{gating_forward.1} parent=1 // pred_region
      _
    $region5: #{gating_forward.1} parent=1 // pred_fallthru
      _
    // Predicated region
    $region6: #{gating_forward.1} parent=1 // pred_check
      _
    $region7: #{gating_forward.1} parent=1 // pred_check_branch
      %21 = sbr.rel (0) target = $region9
    $region8: #{gating_forward.1} parent=1 // pred_region
      _
    $region9: #{gating_forward.1} parent=1 // pred_fallthru
      _
    // Predicated region
    $region10: #{gating_forward.1} parent=1 // pred_check
      _
    $region11: #{gating_forward.1} parent=1 // pred_check_branch
      %23 = sbr.rel (0) target = $region13
    $region12: #{gating_forward.1} parent=1 // pred_region
      _
    $region13: #{gating_forward.1} parent=1 // pred_fallthru
      _
    // Predicated region
    $region14: #{gating_forward.1} parent=1 // pred_check
      _
    $region15: #{gating_forward.1} parent=1 // pred_check_branch
      %25 = sbr.rel (0) target = $region17
    $region16: #{gating_forward.1} parent=1 // pred_region
      _
    $region17: #{gating_forward.1} parent=1 // pred_fallthru
      _
    // Predicated region
    $region18: #{gating_forward.1} parent=1 // pred_check
      _
    $region19: #{gating_forward.1} parent=1 // pred_check_branch
      %27 = sbr.rel (0) target = $region21
    $region20: #{gating_forward.1} parent=1 // pred_region
      _
    $region21: #{gating_forward.1} parent=1 // pred_fallthru
      _
    // Predicated region
    $region22: #{gating_forward.1} parent=1 // pred_check
      _
    $region23: #{gating_forward.1} parent=1 // pred_check_branch
      %29 = sbr.rel (0) target = $region25
    $region24: #{gating_forward.1} parent=1 // pred_region
      _
    $region25: #{gating_forward.1} parent=1 // pred_fallthru
      _
    // Predicated region
    $region26: #{gating_forward.1} parent=1 // pred_check
      _
    $region27: #{gating_forward.1} parent=1 // pred_check_branch
      %31 = sbr.rel (0) target = $region29
    $region28: #{gating_forward.1} parent=1 // pred_region
      _
    $region29: #{gating_forward.1} parent=1 // pred_fallthru
      _
    // Predicated region
    $region30: #{gating_forward.1} parent=1 // pred_check
      _
    $region31: #{gating_forward.1} parent=1 // pred_check_branch
      %33 = sbr.rel (0) target = $region33
    $region32: #{gating_forward.1} parent=1 // pred_region
      _
    $region33: #{gating_forward.1} parent=1 // pred_fallthru
      _
    // Predicated region
    $region34: #{gating_forward.1} parent=1 // pred_check
      _
    $region35: #{gating_forward.1} parent=1 // pred_check_branch
      %35 = sbr.rel (0) target = $region37
    $region36: #{gating_forward.1} parent=1 // pred_region
      _
    $region37: #{gating_forward.1} parent=1 // pred_fallthru
      _
    // Predicated region
    $region38: #{gating_forward.1} parent=1 // pred_check
      _
    $region39: #{gating_forward.1} parent=1 // pred_check_branch
      %37 = sbr.rel (0) target = $region41
    $region40: #{gating_forward.1} parent=1 // pred_region
      _
    $region41: #{gating_forward.1} parent=1 // pred_fallthru
      _
    // Predicated region
    $region42: #{gating_forward.1} parent=1 // pred_check
      _
    $region43: #{gating_forward.1} parent=1 // pred_check_branch
      %39 = sbr.rel (0) target = $region45
    $region44: #{gating_forward.1} parent=1 // pred_region
      _
    $region45: #{gating_forward.1} parent=1 // pred_fallthru
      _
    // Predicated region
    $region46: #{gating_forward.1} parent=1 // pred_check
      _
    $region47: #{gating_forward.1} parent=1 // pred_check_branch
      %41 = sbr.rel (0) target = $region49
    $region48: #{gating_forward.1} parent=1 // pred_region
      _
    $region49: #{gating_forward.1} parent=1 // pred_fallthru
      _
    %v42 = vld [vmem:[%s0] sm:$0xff]
    %v43 = vld [vmem:[%s0 + $0x8] sm:$0xff]
    %v44 = vld [vmem:[%s4] sm:$0xff]
    %v45 = vld [vmem:[%s4 + $0x8] sm:$0xff]
    %v46 = vld [vmem:[%s4 + $0x10] sm:$0xff]
    %v47 = vld [vmem:[%s4 + $0x18] sm:$0xff]
    %v48 = vld [vmem:[%s5] sm:$0x1]
    %v50 = vperm.slane %v48, 0
    %vm52 = vcmask 261120
    %v54 = vsel %vm52, %v42, 0
    %v57 = vsel %vm52, %v43, 0
    %59 = vmatpush.msra.mxu0 0.0
    %60 = vmatpush.msra.mxu0 0.0
    %61 = vmatpush.msra.mxu0 0.0
    %62 = vmatpush.msra.mxu0 0.0
    %63 = vmatpush.msra.mxu0 0.0
    %64 = vmatpush.msra.mxu0 0.0
    %65 = vmatpush.msra.mxu0 0.0
    %66 = vmatpush.msra.mxu0 0.0
    %67 = vmatpush.msra.mxu0 0.0
    %68 = vmatpush.msra.mxu0 0.0
    %69 = vmatpush.msra.mxu0 0.0
    %70 = vmatpush.msra.mxu0 0.0
    %71 = vmatpush.msra.mxu0 %v47
    %72 = vmatpush.msra.mxu0 %v46
    %73 = vmatpush.msra.mxu0 %v45
    %74 = vmatpush.msra.mxu0 %v44
    %75 = vmatmul.f32.gmra.mxu0 %v54
    %v76 = vpop.f32.mrf.mxu0
    %v77 = vadd.f32 %v50, %v76
    %78 = vmatmul.f32.gmra.mxu0 %v57
    %v79 = vpop.f32.mrf.mxu0
    %v80 = vadd.f32 %v50, %v79
    %81 = vdwg.mxu0
    %v82 = vmul.f32 %v77, 0.5
    %v83 = vmul.f32 %v80, 0.5
    %v84 = vmul.f32 %v77, 0.70710677
    %v85 = vmul.f32 %v80, 0.70710677
    %v86 = vmul.f32 %v84, %v84
    %v87 = vmin.f32 16.0, %v86
    %v88 = vmul.f32 %v87, 2.1237322e-06
    %v89 = vadd.f32 %v88, 0.00028619796
    %v90 = vmul.f32 %v87, %v89
    %v91 = vadd.f32 %v90, 0.0036580483
    %v92 = vmul.f32 %v87, %v91
    %v93 = vadd.f32 %v92, 0.05243302
    %v94 = vmul.f32 %v87, %v93
    %v95 = vadd.f32 %v94, 0.18741608
    %v96 = vmul.f32 %v87, %v95
    %v97 = vadd.f32 %v96, 1.1283791
    %v98 = vmul.f32 %v84, %v97
    %v99 = vmul.f32 %v87, 3.8918573e-05
    %v100 = vadd.f32 %v99, 0.001143296
    %v101 = vmul.f32 %v87, %v100
    %v102 = vadd.f32 %v101, 0.014752088
    %v103 = vmul.f32 %v87, %v102
    %v104 = vadd.f32 %v103, 0.112945676
    %v105 = vmul.f32 %v87, %v104
    %v106 = vadd.f32 %v105, 0.4994258
    %v107 = vmul.f32 %v87, %v106
    %v108 = vadd.f32 %v107, 1.0
    %v109 = vrcp.pop %v108
    %v110 = vmul.f32 %v108, %v109
    %v111 = vsub.f32 1.0, %v110
    %v112 = vmul.f32 %v109, %v111
    %v113 = vadd.f32 %v109, %v112
    %vm114 = vweird.f32 %v108
    %vm115 = vweird.f32 %v109
    %vm116 = vmor %vm114, %vm115
    %v117 = vsel %vm116, %v109, %v113
    %v118 = vand.u32 2147483647, %v108
    %vm119 = vcmp.eq.f32.partialorder %v118, 8.507059e+37
    %v120 = vand.u32 %v108, 2147483648
    %v121 = vor.u32 1.1754944e-38, %v120
    %v122 = vsel %vm119, %v121, %v117
    %v123 = vmul.f32 %v98, %v122
    %v124 = vmin.f32 %v123, 1.0
    %v125 = vmax.f32 %v124, -1.0
    %v126 = vmul.f32 %v85, %v85
    %v127 = vmin.f32 16.0, %v126
    %v128 = vmul.f32 %v127, 2.1237322e-06
    %v129 = vadd.f32 %v128, 0.00028619796
    %v130 = vmul.f32 %v127, %v129
    %v131 = vadd.f32 %v130, 0.0036580483
    %v132 = vmul.f32 %v127, %v131
    %v133 = vadd.f32 %v132, 0.05243302
    %v134 = vmul.f32 %v127, %v133
    %v135 = vadd.f32 %v134, 0.18741608
    %v136 = vmul.f32 %v127, %v135
    %v137 = vadd.f32 %v136, 1.1283791
    %v138 = vmul.f32 %v85, %v137
    %v139 = vmul.f32 %v127, 3.8918573e-05
    %v140 = vadd.f32 %v139, 0.001143296
    %v141 = vmul.f32 %v127, %v140
    %v142 = vadd.f32 %v141, 0.014752088
    %v143 = vmul.f32 %v127, %v142
    %v144 = vadd.f32 %v143, 0.112945676
    %v145 = vmul.f32 %v127, %v144
    %v146 = vadd.f32 %v145, 0.4994258
    %v147 = vmul.f32 %v127, %v146
    %v148 = vadd.f32 %v147, 1.0
    %v149 = vrcp.pop %v148
    %v150 = vmul.f32 %v148, %v149
    %v151 = vsub.f32 1.0, %v150
    %v152 = vmul.f32 %v149, %v151
    %v153 = vadd.f32 %v149, %v152
    %vm154 = vweird.f32 %v148
    %vm155 = vweird.f32 %v149
    %vm156 = vmor %vm154, %vm155
    %v157 = vsel %vm156, %v149, %v153
    %v158 = vand.u32 2147483647, %v148
    %vm159 = vcmp.eq.f32.partialorder %v158, 8.507059e+37
    %v160 = vand.u32 %v148, 2147483648
    %v161 = vor.u32 1.1754944e-38, %v160
    %v162 = vsel %vm159, %v161, %v157
    %v163 = vmul.f32 %v138, %v162
    %v164 = vmin.f32 %v163, 1.0
    %v165 = vmax.f32 %v164, -1.0
    %v166 = vadd.f32 %v125, 1.0
    %v167 = vadd.f32 %v165, 1.0
    %v168 = vmul.f32 %v82, %v166
    %v169 = vmul.f32 %v83, %v167
    %v170 = vld [vmem:[%s6] sm:$0xff]
    %v171 = vld [vmem:[%s6 + $0x8] sm:$0xff]
    %v172 = vld [vmem:[%s6 + $0x10] sm:$0xff]
    %v173 = vld [vmem:[%s6 + $0x18] sm:$0xff]
    %v174 = vld [vmem:[%s6 + $0x20] sm:$0xff]
    %v175 = vld [vmem:[%s6 + $0x28] sm:$0xff]
    %v176 = vld [vmem:[%s6 + $0x30] sm:$0xff]
    %v177 = vld [vmem:[%s6 + $0x38] sm:$0xff]
    %v178 = vld [vmem:[%s6 + $0x40] sm:$0xff]
    %v179 = vld [vmem:[%s6 + $0x48] sm:$0xff]
    %v180 = vld [vmem:[%s6 + $0x50] sm:$0xff]
    %v181 = vld [vmem:[%s6 + $0x58] sm:$0xff]
    %v182 = vld [vmem:[%s6 + $0x60] sm:$0xff]
    %v183 = vld [vmem:[%s6 + $0x68] sm:$0xff]
    %v184 = vld [vmem:[%s6 + $0x70] sm:$0xff]
    %v185 = vld [vmem:[%s6 + $0x78] sm:$0xff]
    %v186 = vld [vmem:[%s7] sm:$0x1]
    %v188 = vperm.slane %v186, 0
    %190 = vmatpush.msra.mxu0 %v185
    %191 = vmatpush.msra.mxu0 %v184
    %192 = vmatpush.msra.mxu0 %v183
    %193 = vmatpush.msra.mxu0 %v182
    %194 = vmatpush.msra.mxu0 %v181
    %195 = vmatpush.msra.mxu0 %v180
    %196 = vmatpush.msra.mxu0 %v179
    %197 = vmatpush.msra.mxu0 %v178
    %198 = vmatpush.msra.mxu0 %v177
    %199 = vmatpush.msra.mxu0 %v176
    %200 = vmatpush.msra.mxu0 %v175
    %201 = vmatpush.msra.mxu0 %v174
    %202 = vmatpush.msra.mxu0 %v173
    %203 = vmatpush.msra.mxu0 %v172
    %204 = vmatpush.msra.mxu0 %v171
    %205 = vmatpush.msra.mxu0 %v170
    %206 = vmatmul.f32.gmra.mxu0 %v168
    %v207 = vpop.f32.mrf.mxu0
    %v208 = vadd.f32 %v188, %v207
    %209 = vmatmul.f32.gmra.mxu0 %v169
    %v210 = vpop.f32.mrf.mxu0
    %v211 = vadd.f32 %v188, %v210
    %212 = vdwg.mxu0
    %v213 = vld [vmem:[%s8] sm:$0xff]
    %v214 = vld [vmem:[%s8 + $0x8] sm:$0xff]
    %v215 = vld [vmem:[%s8 + $0x10] sm:$0xff]
    %v216 = vld [vmem:[%s8 + $0x18] sm:$0xff]
    %v217 = vld [vmem:[%s8 + $0x20] sm:$0xff]
    %v218 = vld [vmem:[%s8 + $0x28] sm:$0xff]
    %v219 = vld [vmem:[%s8 + $0x30] sm:$0xff]
    %v220 = vld [vmem:[%s8 + $0x38] sm:$0xff]
    %v221 = vld [vmem:[%s8 + $0x40] sm:$0xff]
    %v222 = vld [vmem:[%s8 + $0x48] sm:$0xff]
    %v223 = vld [vmem:[%s8 + $0x50] sm:$0xff]
    %v224 = vld [vmem:[%s8 + $0x58] sm:$0xff]
    %v225 = vld [vmem:[%s9] sm:$0x7]
    %v227 = vperm.slane %v225, 0
    %v228 = vperm.slane %v225, 1
    %v229 = vperm.slane %v225, 2
    %v234 = vsel %vm52, %v208, 0
    %v237 = vsel %vm52, %v211, 0
    %239 = vmatpush.msra.mxu0 0.0
    %240 = vmatpush.msra.mxu0 0.0
    %241 = vmatpush.msra.mxu0 0.0
    %242 = vmatpush.msra.mxu0 0.0
    %243 = vmatpush.msra.mxu0 0.0
    %244 = vmatpush.msra.mxu0 0.0
    %245 = vmatpush.msra.mxu0 0.0
    %246 = vmatpush.msra.mxu0 0.0
    %247 = vmatpush.msra.mxu0 0.0
    %248 = vmatpush.msra.mxu0 0.0
    %249 = vmatpush.msra.mxu0 0.0
    %250 = vmatpush.msra.mxu0 0.0
    %251 = vmatpush.msra.mxu0 %v222
    %252 = vmatpush.msra.mxu0 %v219
    %253 = vmatpush.msra.mxu0 %v216
    %254 = vmatpush.msra.mxu0 %v213
    %255 = vmatmul.f32.gmra.mxu0 %v234
    %v256 = vpop.f32.mrf.mxu0
    %v257 = vadd.f32 %v227, %v256
    %258 = vmatmul.f32.gmra.mxu0 %v237
    %v259 = vpop.f32.mrf.mxu0
    %v260 = vadd.f32 %v227, %v259
    %261 = vdwg.mxu0
    %262 = vmatpush.msra.mxu0 0.0
    %263 = vmatpush.msra.mxu0 0.0
    %264 = vmatpush.msra.mxu0 0.0
    %265 = vmatpush.msra.mxu0 0.0
    %266 = vmatpush.msra.mxu0 0.0
    %267 = vmatpush.msra.mxu0 0.0
    %268 = vmatpush.msra.mxu0 0.0
    %269 = vmatpush.msra.mxu0 0.0
    %270 = vmatpush.msra.mxu0 0.0
    %271 = vmatpush.msra.mxu0 0.0
    %272 = vmatpush.msra.mxu0 0.0
    %273 = vmatpush.msra.mxu0 0.0
    %274 = vmatpush.msra.mxu0 %v223
    %275 = vmatpush.msra.mxu0 %v220
    %276 = vmatpush.msra.mxu0 %v217
    %277 = vmatpush.msra.mxu0 %v214
    %278 = vmatmul.f32.gmra.mxu0 %v234
    %v279 = vpop.f32.mrf.mxu0
    %v280 = vadd.f32 %v228, %v279
    %281 = vmatmul.f32.gmra.mxu0 %v237
    %v282 = vpop.f32.mrf.mxu0
    %v283 = vadd.f32 %v228, %v282
    %284 = vdwg.mxu0
    %285 = vmatpush.msra.mxu0 0.0
    %286 = vmatpush.msra.mxu0 0.0
    %287 = vmatpush.msra.mxu0 0.0
    %288 = vmatpush.msra.mxu0 0.0
    %289 = vmatpush.msra.mxu0 0.0
    %290 = vmatpush.msra.mxu0 0.0
    %291 = vmatpush.msra.mxu0 0.0
    %292 = vmatpush.msra.mxu0 0.0
    %293 = vmatpush.msra.mxu0 0.0
    %294 = vmatpush.msra.mxu0 0.0
    %295 = vmatpush.msra.mxu0 0.0
    %296 = vmatpush.msra.mxu0 0.0
    %297 = vmatpush.msra.mxu0 %v224
    %298 = vmatpush.msra.mxu0 %v221
    %299 = vmatpush.msra.mxu0 %v218
    %300 = vmatpush.msra.mxu0 %v215
    %301 = vmatmul.f32.gmra.mxu0 %v234
    %v302 = vpop.f32.mrf.mxu0
    %v303 = vadd.f32 %v229, %v302
    %304 = vmatmul.f32.gmra.mxu0 %v237
    %v305 = vpop.f32.mrf.mxu0
    %v306 = vadd.f32 %v229, %v305
    %307 = vdwg.mxu0
    %v308 = vmul.f32 %v257, 0.5
    %v309 = vmul.f32 %v280, 0.5
    %v310 = vmul.f32 %v303, 0.5
    %v311 = vmul.f32 %v260, 0.5
    %v312 = vmul.f32 %v283, 0.5
    %v313 = vmul.f32 %v306, 0.5
    %v314 = vmul.f32 %v257, 0.70710677
    %v315 = vmul.f32 %v280, 0.70710677
    %v316 = vmul.f32 %v303, 0.70710677
    %v317 = vmul.f32 %v260, 0.70710677
    %v318 = vmul.f32 %v283, 0.70710677
    %v319 = vmul.f32 %v306, 0.70710677
    %v320 = vmul.f32 %v314, %v314
    %v321 = vmin.f32 16.0, %v320
    %v322 = vmul.f32 %v321, 2.1237322e-06
    %v323 = vadd.f32 %v322, 0.00028619796
    %v324 = vmul.f32 %v321, %v323
    %v325 = vadd.f32 %v324, 0.0036580483
    %v326 = vmul.f32 %v321, %v325
    %v327 = vadd.f32 %v326, 0.05243302
    %v328 = vmul.f32 %v321, %v327
    %v329 = vadd.f32 %v328, 0.18741608
    %v330 = vmul.f32 %v321, %v329
    %v331 = vadd.f32 %v330, 1.1283791
    %v332 = vmul.f32 %v314, %v331
    %v333 = vmul.f32 %v321, 3.8918573e-05
    %v334 = vadd.f32 %v333, 0.001143296
    %v335 = vmul.f32 %v321, %v334
    %v336 = vadd.f32 %v335, 0.014752088
    %v337 = vmul.f32 %v321, %v336
    %v338 = vadd.f32 %v337, 0.112945676
    %v339 = vmul.f32 %v321, %v338
    %v340 = vadd.f32 %v339, 0.4994258
    %v341 = vmul.f32 %v321, %v340
    %v342 = vadd.f32 %v341, 1.0
    %v343 = vrcp.pop %v342
    %v344 = vmul.f32 %v342, %v343
    %v345 = vsub.f32 1.0, %v344
    %v346 = vmul.f32 %v343, %v345
    %v347 = vadd.f32 %v343, %v346
    %vm348 = vweird.f32 %v342
    %vm349 = vweird.f32 %v343
    %vm350 = vmor %vm348, %vm349
    %v351 = vsel %vm350, %v343, %v347
    %v352 = vand.u32 2147483647, %v342
    %vm353 = vcmp.eq.f32.partialorder %v352, 8.507059e+37
    %v354 = vand.u32 %v342, 2147483648
    %v355 = vor.u32 1.1754944e-38, %v354
    %v356 = vsel %vm353, %v355, %v351
    %v357 = vmul.f32 %v332, %v356
    %v358 = vmin.f32 %v357, 1.0
    %v359 = vmax.f32 %v358, -1.0
    %v360 = vmul.f32 %v315, %v315
    %v361 = vmin.f32 16.0, %v360
    %v362 = vmul.f32 %v361, 2.1237322e-06
    %v363 = vadd.f32 %v362, 0.00028619796
    %v364 = vmul.f32 %v361, %v363
    %v365 = vadd.f32 %v364, 0.0036580483
    %v366 = vmul.f32 %v361, %v365
    %v367 = vadd.f32 %v366, 0.05243302
    %v368 = vmul.f32 %v361, %v367
    %v369 = vadd.f32 %v368, 0.18741608
    %v370 = vmul.f32 %v361, %v369
    %v371 = vadd.f32 %v370, 1.1283791
    %v372 = vmul.f32 %v315, %v371
    %v373 = vmul.f32 %v361, 3.8918573e-05
    %v374 = vadd.f32 %v373, 0.001143296
    %v375 = vmul.f32 %v361, %v374
    %v376 = vadd.f32 %v375, 0.014752088
    %v377 = vmul.f32 %v361, %v376
    %v378 = vadd.f32 %v377, 0.112945676
    %v379 = vmul.f32 %v361, %v378
    %v380 = vadd.f32 %v379, 0.4994258
    %v381 = vmul.f32 %v361, %v380
    %v382 = vadd.f32 %v381, 1.0
    %v383 = vrcp.pop %v382
    %v384 = vmul.f32 %v382, %v383
    %v385 = vsub.f32 1.0, %v384
    %v386 = vmul.f32 %v383, %v385
    %v387 = vadd.f32 %v383, %v386
    %vm388 = vweird.f32 %v382
    %vm389 = vweird.f32 %v383
    %vm390 = vmor %vm388, %vm389
    %v391 = vsel %vm390, %v383, %v387
    %v392 = vand.u32 2147483647, %v382
    %vm393 = vcmp.eq.f32.partialorder %v392, 8.507059e+37
    %v394 = vand.u32 %v382, 2147483648
    %v395 = vor.u32 1.1754944e-38, %v394
    %v396 = vsel %vm393, %v395, %v391
    %v397 = vmul.f32 %v372, %v396
    %v398 = vmin.f32 %v397, 1.0
    %v399 = vmax.f32 %v398, -1.0
    %v400 = vmul.f32 %v316, %v316
    %v401 = vmin.f32 16.0, %v400
    %v402 = vmul.f32 %v401, 2.1237322e-06
    %v403 = vadd.f32 %v402, 0.00028619796
    %v404 = vmul.f32 %v401, %v403
    %v405 = vadd.f32 %v404, 0.0036580483
    %v406 = vmul.f32 %v401, %v405
    %v407 = vadd.f32 %v406, 0.05243302
    %v408 = vmul.f32 %v401, %v407
    %v409 = vadd.f32 %v408, 0.18741608
    %v410 = vmul.f32 %v401, %v409
    %v411 = vadd.f32 %v410, 1.1283791
    %v412 = vmul.f32 %v316, %v411
    %v413 = vmul.f32 %v401, 3.8918573e-05
    %v414 = vadd.f32 %v413, 0.001143296
    %v415 = vmul.f32 %v401, %v414
    %v416 = vadd.f32 %v415, 0.014752088
    %v417 = vmul.f32 %v401, %v416
    %v418 = vadd.f32 %v417, 0.112945676
    %v419 = vmul.f32 %v401, %v418
    %v420 = vadd.f32 %v419, 0.4994258
    %v421 = vmul.f32 %v401, %v420
    %v422 = vadd.f32 %v421, 1.0
    %v423 = vrcp.pop %v422
    %v424 = vmul.f32 %v422, %v423
    %v425 = vsub.f32 1.0, %v424
    %v426 = vmul.f32 %v423, %v425
    %v427 = vadd.f32 %v423, %v426
    %vm428 = vweird.f32 %v422
    %vm429 = vweird.f32 %v423
    %vm430 = vmor %vm428, %vm429
    %v431 = vsel %vm430, %v423, %v427
    %v432 = vand.u32 2147483647, %v422
    %vm433 = vcmp.eq.f32.partialorder %v432, 8.507059e+37
    %v434 = vand.u32 %v422, 2147483648
    %v435 = vor.u32 1.1754944e-38, %v434
    %v436 = vsel %vm433, %v435, %v431
    %v437 = vmul.f32 %v412, %v436
    %v438 = vmin.f32 %v437, 1.0
    %v439 = vmax.f32 %v438, -1.0
    %v440 = vmul.f32 %v317, %v317
    %v441 = vmin.f32 16.0, %v440
    %v442 = vmul.f32 %v441, 2.1237322e-06
    %v443 = vadd.f32 %v442, 0.00028619796
    %v444 = vmul.f32 %v441, %v443
    %v445 = vadd.f32 %v444, 0.0036580483
    %v446 = vmul.f32 %v441, %v445
    %v447 = vadd.f32 %v446, 0.05243302
    %v448 = vmul.f32 %v441, %v447
    %v449 = vadd.f32 %v448, 0.18741608
    %v450 = vmul.f32 %v441, %v449
    %v451 = vadd.f32 %v450, 1.1283791
    %v452 = vmul.f32 %v317, %v451
    %v453 = vmul.f32 %v441, 3.8918573e-05
    %v454 = vadd.f32 %v453, 0.001143296
    %v455 = vmul.f32 %v441, %v454
    %v456 = vadd.f32 %v455, 0.014752088
    %v457 = vmul.f32 %v441, %v456
    %v458 = vadd.f32 %v457, 0.112945676
    %v459 = vmul.f32 %v441, %v458
    %v460 = vadd.f32 %v459, 0.4994258
    %v461 = vmul.f32 %v441, %v460
    %v462 = vadd.f32 %v461, 1.0
    %v463 = vrcp.pop %v462
    %v464 = vmul.f32 %v462, %v463
    %v465 = vsub.f32 1.0, %v464
    %v466 = vmul.f32 %v463, %v465
    %v467 = vadd.f32 %v463, %v466
    %vm468 = vweird.f32 %v462
    %vm469 = vweird.f32 %v463
    %vm470 = vmor %vm468, %vm469
    %v471 = vsel %vm470, %v463, %v467
    %v472 = vand.u32 2147483647, %v462
    %vm473 = vcmp.eq.f32.partialorder %v472, 8.507059e+37
    %v474 = vand.u32 %v462, 2147483648
    %v475 = vor.u32 1.1754944e-38, %v474
    %v476 = vsel %vm473, %v475, %v471
    %v477 = vmul.f32 %v452, %v476
    %v478 = vmin.f32 %v477, 1.0
    %v479 = vmax.f32 %v478, -1.0
    %v480 = vmul.f32 %v318, %v318
    %v481 = vmin.f32 16.0, %v480
    %v482 = vmul.f32 %v481, 2.1237322e-06
    %v483 = vadd.f32 %v482, 0.00028619796
    %v484 = vmul.f32 %v481, %v483
    %v485 = vadd.f32 %v484, 0.0036580483
    %v486 = vmul.f32 %v481, %v485
    %v487 = vadd.f32 %v486, 0.05243302
    %v488 = vmul.f32 %v481, %v487
    %v489 = vadd.f32 %v488, 0.18741608
    %v490 = vmul.f32 %v481, %v489
    %v491 = vadd.f32 %v490, 1.1283791
    %v492 = vmul.f32 %v318, %v491
    %v493 = vmul.f32 %v481, 3.8918573e-05
    %v494 = vadd.f32 %v493, 0.001143296
    %v495 = vmul.f32 %v481, %v494
    %v496 = vadd.f32 %v495, 0.014752088
    %v497 = vmul.f32 %v481, %v496
    %v498 = vadd.f32 %v497, 0.112945676
    %v499 = vmul.f32 %v481, %v498
    %v500 = vadd.f32 %v499, 0.4994258
    %v501 = vmul.f32 %v481, %v500
    %v502 = vadd.f32 %v501, 1.0
    %v503 = vrcp.pop %v502
    %v504 = vmul.f32 %v502, %v503
    %v505 = vsub.f32 1.0, %v504
    %v506 = vmul.f32 %v503, %v505
    %v507 = vadd.f32 %v503, %v506
    %vm508 = vweird.f32 %v502
    %vm509 = vweird.f32 %v503
    %vm510 = vmor %vm508, %vm509
    %v511 = vsel %vm510, %v503, %v507
    %v512 = vand.u32 2147483647, %v502
    %vm513 = vcmp.eq.f32.partialorder %v512, 8.507059e+37
    %v514 = vand.u32 %v502, 2147483648
    %v515 = vor.u32 1.1754944e-38, %v514
    %v516 = vsel %vm513, %v515, %v511
    %v517 = vmul.f32 %v492, %v516
    %v518 = vmin.f32 %v517, 1.0
    %v519 = vmax.f32 %v518, -1.0
    %v520 = vmul.f32 %v319, %v319
    %v521 = vmin.f32 16.0, %v520
    %v522 = vmul.f32 %v521, 2.1237322e-06
    %v523 = vadd.f32 %v522, 0.00028619796
    %v524 = vmul.f32 %v521, %v523
    %v525 = vadd.f32 %v524, 0.0036580483
    %v526 = vmul.f32 %v521, %v525
    %v527 = vadd.f32 %v526, 0.05243302
    %v528 = vmul.f32 %v521, %v527
    %v529 = vadd.f32 %v528, 0.18741608
    %v530 = vmul.f32 %v521, %v529
    %v531 = vadd.f32 %v530, 1.1283791
    %v532 = vmul.f32 %v319, %v531
    %v533 = vmul.f32 %v521, 3.8918573e-05
    %v534 = vadd.f32 %v533, 0.001143296
    %v535 = vmul.f32 %v521, %v534
    %v536 = vadd.f32 %v535, 0.014752088
    %v537 = vmul.f32 %v521, %v536
    %v538 = vadd.f32 %v537, 0.112945676
    %v539 = vmul.f32 %v521, %v538
    %v540 = vadd.f32 %v539, 0.4994258
    %v541 = vmul.f32 %v521, %v540
    %v542 = vadd.f32 %v541, 1.0
    %v543 = vrcp.pop %v542
    %v544 = vmul.f32 %v542, %v543
    %v545 = vsub.f32 1.0, %v544
    %v546 = vmul.f32 %v543, %v545
    %v547 = vadd.f32 %v543, %v546
    %vm548 = vweird.f32 %v542
    %vm549 = vweird.f32 %v543
    %vm550 = vmor %vm548, %vm549
    %v551 = vsel %vm550, %v543, %v547
    %v552 = vand.u32 2147483647, %v542
    %vm553 = vcmp.eq.f32.partialorder %v552, 8.507059e+37
    %v554 = vand.u32 %v542, 2147483648
    %v555 = vor.u32 1.1754944e-38, %v554
    %v556 = vsel %vm553, %v555, %v551
    %v557 = vmul.f32 %v532, %v556
    %v558 = vmin.f32 %v557, 1.0
    %v559 = vmax.f32 %v558, -1.0
    %v560 = vadd.f32 %v359, 1.0
    %v561 = vadd.f32 %v399, 1.0
    %v562 = vadd.f32 %v439, 1.0
    %v563 = vadd.f32 %v479, 1.0
    %v564 = vadd.f32 %v519, 1.0
    %v565 = vadd.f32 %v559, 1.0
    %v566 = vmul.f32 %v308, %v560
    %v567 = vmul.f32 %v309, %v561
    %v568 = vmul.f32 %v310, %v562
    %v569 = vmul.f32 %v311, %v563
    %v570 = vmul.f32 %v312, %v564
    %v571 = vmul.f32 %v313, %v565
    %v572 = vrot.slane %v566, 4
    %v573 = vadd.f32 %v566, %v572
    %v574 = vrot.slane %v573, 2
    %v575 = vadd.f32 %v573, %v574
    %v576 = vrot.slane %v575, 1
    %v577 = vadd.f32 %v575, %v576
    %v578 = vrot.slane %v567, 4
    %v579 = vadd.f32 %v567, %v578
    %v580 = vrot.slane %v579, 2
    %v581 = vadd.f32 %v579, %v580
    %v582 = vrot.slane %v581, 1
    %v583 = vadd.f32 %v581, %v582
    %v584 = vrot.slane %v568, 4
    %v585 = vadd.f32 %v568, %v584
    %v586 = vrot.slane %v585, 2
    %v587 = vadd.f32 %v585, %v586
    %v588 = vrot.slane %v587, 1
    %v589 = vadd.f32 %v587, %v588
    %v590 = vrot.slane %v569, 4
    %v591 = vadd.f32 %v569, %v590
    %v592 = vrot.slane %v591, 2
    %v593 = vadd.f32 %v591, %v592
    %v594 = vrot.slane %v593, 1
    %v595 = vadd.f32 %v593, %v594
    %v596 = vrot.slane %v570, 4
    %v597 = vadd.f32 %v570, %v596
    %v598 = vrot.slane %v597, 2
    %v599 = vadd.f32 %v597, %v598
    %v600 = vrot.slane %v599, 1
    %v601 = vadd.f32 %v599, %v600
    %v602 = vrot.slane %v571, 4
    %v603 = vadd.f32 %v571, %v602
    %v604 = vrot.slane %v603, 2
    %v605 = vadd.f32 %v603, %v604
    %v606 = vrot.slane %v605, 1
    %v607 = vadd.f32 %v605, %v606
    %v608 = vrcp.pop 8.0
    %v609 = vmul.f32 8.0, %v608
    %v610 = vsub.f32 1.0, %v609
    %v611 = vmul.f32 %v608, %v610
    %v612 = vadd.f32 %v608, %v611
    %vm613 = vweird.f32 %v608
    %v614 = vsel %vm613, %v608, %v612
    %v615 = vmul.f32 %v577, %v614
    %v616 = vmul.f32 %v583, %v614
    %v617 = vmul.f32 %v589, %v614
    %v618 = vmul.f32 %v595, %v614
    %v619 = vmul.f32 %v601, %v614
    %v620 = vmul.f32 %v607, %v614
    %v621 = vld [vmem:[%s8] sm:$0xff]
    %v622 = vld [vmem:[%s8 + $0x18] sm:$0xff]
    %v623 = vld [vmem:[%s8 + $0x30] sm:$0xff]
    %v624 = vld [vmem:[%s8 + $0x48] sm:$0xff]
    %v625 = vld [vmem:[%s9] sm:$0x1]
    %v626 = vld [vmem:[%s10] sm:$0xff]
    %v627 = vld [vmem:[%s10 + $0x8] sm:$0xff]
    %v628 = vld [vmem:[%s10 + $0x10] sm:$0xff]
    %v629 = vld [vmem:[%s10 + $0x18] sm:$0xff]
    %v630 = vld [vmem:[%s10 + $0x20] sm:$0xff]
    %v631 = vld [vmem:[%s10 + $0x28] sm:$0xff]
    %v632 = vld [vmem:[%s10 + $0x30] sm:$0xff]
    %v633 = vld [vmem:[%s10 + $0x38] sm:$0xff]
    %v634 = vld [vmem:[%s10 + $0x40] sm:$0xff]
    %v635 = vld [vmem:[%s10 + $0x48] sm:$0xff]
    %v636 = vld [vmem:[%s10 + $0x50] sm:$0xff]
    %v637 = vld [vmem:[%s10 + $0x58] sm:$0xff]
    %v638 = vld [vmem:[%s10 + $0x60] sm:$0xff]
    %v639 = vld [vmem:[%s10 + $0x68] sm:$0xff]
    %v640 = vld [vmem:[%s10 + $0x70] sm:$0xff]
    %v641 = vld [vmem:[%s10 + $0x78] sm:$0xff]
    %v642 = vld [vmem:[%s11] sm:$0x1]
    %v644 = vperm.slane %v642, 0
    %vm648 = vcmask 1041409
    %v649 = vsel %vm648, %v618, %v615
    %651 = vmatpush.msra.mxu0 %v641
    %652 = vmatpush.msra.mxu0 %v640
    %653 = vmatpush.msra.mxu0 %v639
    %654 = vmatpush.msra.mxu0 %v638
    %655 = vmatpush.msra.mxu0 %v637
    %656 = vmatpush.msra.mxu0 %v636
    %657 = vmatpush.msra.mxu0 %v635
    %658 = vmatpush.msra.mxu0 %v634
    %659 = vmatpush.msra.mxu0 %v633
    %660 = vmatpush.msra.mxu0 %v632
    %661 = vmatpush.msra.mxu0 %v631
    %662 = vmatpush.msra.mxu0 %v630
    %663 = vmatpush.msra.mxu0 %v629
    %664 = vmatpush.msra.mxu0 %v628
    %665 = vmatpush.msra.mxu0 %v627
    %666 = vmatpush.msra.mxu0 %v626
    %667 = vmatmul.f32.gmra.mxu0 %v649
    %v668 = vpop.f32.mrf.mxu0
    %v669 = vadd.f32 %v644, %v668
    %670 = vdwg.mxu0
    %v671 = vld [vmem:[%s1] sm:$0xff]
    %v672 = vld [vmem:[%s1 + $0x8] sm:$0xff]
    %v674 = vperm.slane %v625, 0
    %v677 = vsel %vm52, %v671, 0
    %v680 = vsel %vm52, %v672, 0
    %682 = vmatpush.msra.mxu0 0.0
    %683 = vmatpush.msra.mxu0 0.0
    %684 = vmatpush.msra.mxu0 0.0
    %685 = vmatpush.msra.mxu0 0.0
    %686 = vmatpush.msra.mxu0 0.0
    %687 = vmatpush.msra.mxu0 0.0
    %688 = vmatpush.msra.mxu0 0.0
    %689 = vmatpush.msra.mxu0 0.0
    %690 = vmatpush.msra.mxu0 0.0
    %691 = vmatpush.msra.mxu0 0.0
    %692 = vmatpush.msra.mxu0 0.0
    %693 = vmatpush.msra.mxu0 0.0
    %694 = vmatpush.msra.mxu0 %v624
    %695 = vmatpush.msra.mxu0 %v623
    %696 = vmatpush.msra.mxu0 %v622
    %697 = vmatpush.msra.mxu0 %v621
    %698 = vmatmul.f32.gmra.mxu0 %v677
    %v699 = vpop.f32.mrf.mxu0
    %v700 = vadd.f32 %v674, %v699
    %701 = vmatmul.f32.gmra.mxu0 %v680
    %v702 = vpop.f32.mrf.mxu0
    %v703 = vadd.f32 %v674, %v702
    %704 = vdwg.mxu0
    %v705 = vmul.f32 %v700, 0.5
    %v706 = vmul.f32 %v703, 0.5
    %v707 = vmul.f32 %v700, 0.70710677
    %v708 = vmul.f32 %v703, 0.70710677
    %v709 = vmul.f32 %v707, %v707
    %v710 = vmin.f32 16.0, %v709
    %v711 = vmul.f32 %v710, 2.1237322e-06
    %v712 = vadd.f32 %v711, 0.00028619796
    %v713 = vmul.f32 %v710, %v712
    %v714 = vadd.f32 %v713, 0.0036580483
    %v715 = vmul.f32 %v710, %v714
    %v716 = vadd.f32 %v715, 0.05243302
    %v717 = vmul.f32 %v710, %v716
    %v718 = vadd.f32 %v717, 0.18741608
    %v719 = vmul.f32 %v710, %v718
    %v720 = vadd.f32 %v719, 1.1283791
    %v721 = vmul.f32 %v707, %v720
    %v722 = vmul.f32 %v710, 3.8918573e-05
    %v723 = vadd.f32 %v722, 0.001143296
    %v724 = vmul.f32 %v710, %v723
    %v725 = vadd.f32 %v724, 0.014752088
    %v726 = vmul.f32 %v710, %v725
    %v727 = vadd.f32 %v726, 0.112945676
    %v728 = vmul.f32 %v710, %v727
    %v729 = vadd.f32 %v728, 0.4994258
    %v730 = vmul.f32 %v710, %v729
    %v731 = vadd.f32 %v730, 1.0
    %v732 = vrcp.pop %v731
    %v733 = vmul.f32 %v731, %v732
    %v734 = vsub.f32 1.0, %v733
    %v735 = vmul.f32 %v732, %v734
    %v736 = vadd.f32 %v732, %v735
    %vm737 = vweird.f32 %v731
    %vm738 = vweird.f32 %v732
    %vm739 = vmor %vm737, %vm738
    %v740 = vsel %vm739, %v732, %v736
    %v741 = vand.u32 2147483647, %v731
    %vm742 = vcmp.eq.f32.partialorder %v741, 8.507059e+37
    %v743 = vand.u32 %v731, 2147483648
    %v744 = vor.u32 1.1754944e-38, %v743
    %v745 = vsel %vm742, %v744, %v740
    %v746 = vmul.f32 %v721, %v745
    %v747 = vmin.f32 %v746, 1.0
    %v748 = vmax.f32 %v747, -1.0
    %v749 = vmul.f32 %v708, %v708
    %v750 = vmin.f32 16.0, %v749
    %v751 = vmul.f32 %v750, 2.1237322e-06
    %v752 = vadd.f32 %v751, 0.00028619796
    %v753 = vmul.f32 %v750, %v752
    %v754 = vadd.f32 %v753, 0.0036580483
    %v755 = vmul.f32 %v750, %v754
    %v756 = vadd.f32 %v755, 0.05243302
    %v757 = vmul.f32 %v750, %v756
    %v758 = vadd.f32 %v757, 0.18741608
    %v759 = vmul.f32 %v750, %v758
    %v760 = vadd.f32 %v759, 1.1283791
    %v761 = vmul.f32 %v708, %v760
    %v762 = vmul.f32 %v750, 3.8918573e-05
    %v763 = vadd.f32 %v762, 0.001143296
    %v764 = vmul.f32 %v750, %v763
    %v765 = vadd.f32 %v764, 0.014752088
    %v766 = vmul.f32 %v750, %v765
    %v767 = vadd.f32 %v766, 0.112945676
    %v768 = vmul.f32 %v750, %v767
    %v769 = vadd.f32 %v768, 0.4994258
    %v770 = vmul.f32 %v750, %v769
    %v771 = vadd.f32 %v770, 1.0
    %v772 = vrcp.pop %v771
    %v773 = vmul.f32 %v771, %v772
    %v774 = vsub.f32 1.0, %v773
    %v775 = vmul.f32 %v772, %v774
    %v776 = vadd.f32 %v772, %v775
    %vm777 = vweird.f32 %v771
    %vm778 = vweird.f32 %v772
    %vm779 = vmor %vm777, %vm778
    %v780 = vsel %vm779, %v772, %v776
    %v781 = vand.u32 2147483647, %v771
    %vm782 = vcmp.eq.f32.partialorder %v781, 8.507059e+37
    %v783 = vand.u32 %v771, 2147483648
    %v784 = vor.u32 1.1754944e-38, %v783
    %v785 = vsel %vm782, %v784, %v780
    %v786 = vmul.f32 %v761, %v785
    %v787 = vmin.f32 %v786, 1.0
    %v788 = vmax.f32 %v787, -1.0
    %v789 = vadd.f32 %v748, 1.0
    %v790 = vadd.f32 %v788, 1.0
    %v791 = vmul.f32 %v705, %v789
    %v792 = vmul.f32 %v706, %v790
    %793 = vmatpush.msra.mxu0 %v641
    %794 = vmatpush.msra.mxu0 %v640
    %795 = vmatpush.msra.mxu0 %v639
    %796 = vmatpush.msra.mxu0 %v638
    %797 = vmatpush.msra.mxu0 %v637
    %798 = vmatpush.msra.mxu0 %v636
    %799 = vmatpush.msra.mxu0 %v635
    %800 = vmatpush.msra.mxu0 %v634
    %801 = vmatpush.msra.mxu0 %v633
    %802 = vmatpush.msra.mxu0 %v632
    %803 = vmatpush.msra.mxu0 %v631
    %804 = vmatpush.msra.mxu0 %v630
    %805 = vmatpush.msra.mxu0 %v629
    %806 = vmatpush.msra.mxu0 %v628
    %807 = vmatpush.msra.mxu0 %v627
    %808 = vmatpush.msra.mxu0 %v626
    %809 = vmatmul.f32.gmra.mxu0 %v791
    %v810 = vpop.f32.mrf.mxu0
    %v811 = vadd.f32 %v644, %v810
    %812 = vmatmul.f32.gmra.mxu0 %v792
    %v813 = vpop.f32.mrf.mxu0
    %v814 = vadd.f32 %v644, %v813
    %815 = vdwg.mxu0
    %v817 = vrot.slane %v669, 1
    %v818 = vperm.slane %v669, 0
    %v819 = vperm.slane %v817, 0
    %v822 = vmul.f32 %v811, %v818
    %v823 = vmul.f32 %v814, %v819
    %v824 = vsel %vm52, %v822, 0.0
    %825 = vadd.xlane.f32.xlu0 %v824
    %v826 = vpop.xlane.xlu0 %825
    %v827 = vsel %vm52, %v823, 0.0
    %828 = vadd.xlane.f32.xlu0 %v827
    %v829 = vpop.xlane.xlu0 %828
    %v830 = vxor.u32 %v826, 2147483648
    %v831 = vxor.u32 %v829, 2147483648
    %v832 = vmul.f32 %v830, 1.442695
    %v833 = vpow.pop %v832
    %v834 = vmul.f32 %v831, 1.442695
    %v835 = vpow.pop %v834
    %v836 = vadd.f32 %v833, 1.0
    %v837 = vadd.f32 %v835, 1.0
    %v838 = vrcp.pop %v836
    %v839 = vmul.f32 %v836, %v838
    %v840 = vsub.f32 1.0, %v839
    %v841 = vmul.f32 %v838, %v840
    %v842 = vadd.f32 %v838, %v841
    %vm843 = vweird.f32 %v836
    %vm844 = vweird.f32 %v838
    %vm845 = vmor %vm843, %vm844
    %v846 = vsel %vm845, %v838, %v842
    %v847 = vand.u32 2147483647, %v836
    %vm848 = vcmp.eq.f32.partialorder %v847, 8.507059e+37
    %v849 = vand.u32 %v836, 2147483648
    %v850 = vor.u32 1.1754944e-38, %v849
    %v851 = vsel %vm848, %v850, %v846
    %v852 = vmul.f32 1.0, %v851
    %v853 = vrcp.pop %v837
    %v854 = vmul.f32 %v837, %v853
    %v855 = vsub.f32 1.0, %v854
    %v856 = vmul.f32 %v853, %v855
    %v857 = vadd.f32 %v853, %v856
    %vm858 = vweird.f32 %v837
    %vm859 = vweird.f32 %v853
    %vm860 = vmor %vm858, %vm859
    %v861 = vsel %vm860, %v853, %v857
    %v862 = vand.u32 2147483647, %v837
    %vm863 = vcmp.eq.f32.partialorder %v862, 8.507059e+37
    %v864 = vand.u32 %v837, 2147483648
    %v865 = vor.u32 1.1754944e-38, %v864
    %v866 = vsel %vm863, %v865, %v861
    %v867 = vmul.f32 1.0, %v866
    %v868 = vmul.f32 %v852, %v671
    %v869 = vmul.f32 %v867, %v672
    %870 = vst.msk [vmem:[#allocation2] sm:$0xff] %vm52, %v868
    %871 = vst.msk [vmem:[#allocation2 + $0x18] sm:$0xff] %vm52, %v869
    %v872 = vld [vmem:[%s8 + $0x8] sm:$0xff]
    %v873 = vld [vmem:[%s8 + $0x20] sm:$0xff]
    %v874 = vld [vmem:[%s8 + $0x38] sm:$0xff]
    %v875 = vld [vmem:[%s8 + $0x50] sm:$0xff]
    %v876 = vld [vmem:[%s9 + $0x1] sm:$0x1]
    %s877 = scalar_lea.vmem %s10, 128
    %v878 = vld [vmem:[%s877] sm:$0xff]
    %v879 = vld [vmem:[%s877 + $0x8] sm:$0xff]
    %v880 = vld [vmem:[%s877 + $0x10] sm:$0xff]
    %v881 = vld [vmem:[%s877 + $0x18] sm:$0xff]
    %v882 = vld [vmem:[%s877 + $0x20] sm:$0xff]
    %v883 = vld [vmem:[%s877 + $0x28] sm:$0xff]
    %v884 = vld [vmem:[%s877 + $0x30] sm:$0xff]
    %v885 = vld [vmem:[%s877 + $0x38] sm:$0xff]
    %v886 = vld [vmem:[%s877 + $0x40] sm:$0xff]
    %v887 = vld [vmem:[%s877 + $0x48] sm:$0xff]
    %v888 = vld [vmem:[%s877 + $0x50] sm:$0xff]
    %v889 = vld [vmem:[%s877 + $0x58] sm:$0xff]
    %v890 = vld [vmem:[%s877 + $0x60] sm:$0xff]
    %v891 = vld [vmem:[%s877 + $0x68] sm:$0xff]
    %v892 = vld [vmem:[%s877 + $0x70] sm:$0xff]
    %v893 = vld [vmem:[%s877 + $0x78] sm:$0xff]
    %s894 = scalar_lea.vmem %s11, 1
    %v895 = vld [vmem:[%s894] sm:$0x1]
    %v897 = vperm.slane %v895, 0
    %v901 = vsel %vm648, %v619, %v616
    %903 = vmatpush.msra.mxu0 %v893
    %904 = vmatpush.msra.mxu0 %v892
    %905 = vmatpush.msra.mxu0 %v891
    %906 = vmatpush.msra.mxu0 %v890
    %907 = vmatpush.msra.mxu0 %v889
    %908 = vmatpush.msra.mxu0 %v888
    %909 = vmatpush.msra.mxu0 %v887
    %910 = vmatpush.msra.mxu0 %v886
    %911 = vmatpush.msra.mxu0 %v885
    %912 = vmatpush.msra.mxu0 %v884
    %913 = vmatpush.msra.mxu0 %v883
    %914 = vmatpush.msra.mxu0 %v882
    %915 = vmatpush.msra.mxu0 %v881
    %916 = vmatpush.msra.mxu0 %v880
    %917 = vmatpush.msra.mxu0 %v879
    %918 = vmatpush.msra.mxu0 %v878
    %919 = vmatmul.f32.gmra.mxu0 %v901
    %v920 = vpop.f32.mrf.mxu0
    %v921 = vadd.f32 %v897, %v920
    %922 = vdwg.mxu0
    %v923 = vld [vmem:[%s2] sm:$0xff]
    %v924 = vld [vmem:[%s2 + $0x8] sm:$0xff]
    %v926 = vperm.slane %v876, 0
    %v929 = vsel %vm52, %v923, 0
    %v932 = vsel %vm52, %v924, 0
    %934 = vmatpush.msra.mxu0 0.0
    %935 = vmatpush.msra.mxu0 0.0
    %936 = vmatpush.msra.mxu0 0.0
    %937 = vmatpush.msra.mxu0 0.0
    %938 = vmatpush.msra.mxu0 0.0
    %939 = vmatpush.msra.mxu0 0.0
    %940 = vmatpush.msra.mxu0 0.0
    %941 = vmatpush.msra.mxu0 0.0
    %942 = vmatpush.msra.mxu0 0.0
    %943 = vmatpush.msra.mxu0 0.0
    %944 = vmatpush.msra.mxu0 0.0
    %945 = vmatpush.msra.mxu0 0.0
    %946 = vmatpush.msra.mxu0 %v875
    %947 = vmatpush.msra.mxu0 %v874
    %948 = vmatpush.msra.mxu0 %v873
    %949 = vmatpush.msra.mxu0 %v872
    %950 = vmatmul.f32.gmra.mxu0 %v929
    %v951 = vpop.f32.mrf.mxu0
    %v952 = vadd.f32 %v926, %v951
    %953 = vmatmul.f32.gmra.mxu0 %v932
    %v954 = vpop.f32.mrf.mxu0
    %v955 = vadd.f32 %v926, %v954
    %956 = vdwg.mxu0
    %v957 = vmul.f32 %v952, 0.5
    %v958 = vmul.f32 %v955, 0.5
    %v959 = vmul.f32 %v952, 0.70710677
    %v960 = vmul.f32 %v955, 0.70710677
    %v961 = vmul.f32 %v959, %v959
    %v962 = vmin.f32 16.0, %v961
    %v963 = vmul.f32 %v962, 2.1237322e-06
    %v964 = vadd.f32 %v963, 0.00028619796
    %v965 = vmul.f32 %v962, %v964
    %v966 = vadd.f32 %v965, 0.0036580483
    %v967 = vmul.f32 %v962, %v966
    %v968 = vadd.f32 %v967, 0.05243302
    %v969 = vmul.f32 %v962, %v968
    %v970 = vadd.f32 %v969, 0.18741608
    %v971 = vmul.f32 %v962, %v970
    %v972 = vadd.f32 %v971, 1.1283791
    %v973 = vmul.f32 %v959, %v972
    %v974 = vmul.f32 %v962, 3.8918573e-05
    %v975 = vadd.f32 %v974, 0.001143296
    %v976 = vmul.f32 %v962, %v975
    %v977 = vadd.f32 %v976, 0.014752088
    %v978 = vmul.f32 %v962, %v977
    %v979 = vadd.f32 %v978, 0.112945676
    %v980 = vmul.f32 %v962, %v979
    %v981 = vadd.f32 %v980, 0.4994258
    %v982 = vmul.f32 %v962, %v981
    %v983 = vadd.f32 %v982, 1.0
    %v984 = vrcp.pop %v983
    %v985 = vmul.f32 %v983, %v984
    %v986 = vsub.f32 1.0, %v985
    %v987 = vmul.f32 %v984, %v986
    %v988 = vadd.f32 %v984, %v987
    %vm989 = vweird.f32 %v983
    %vm990 = vweird.f32 %v984
    %vm991 = vmor %vm989, %vm990
    %v992 = vsel %vm991, %v984, %v988
    %v993 = vand.u32 2147483647, %v983
    %vm994 = vcmp.eq.f32.partialorder %v993, 8.507059e+37
    %v995 = vand.u32 %v983, 2147483648
    %v996 = vor.u32 1.1754944e-38, %v995
    %v997 = vsel %vm994, %v996, %v992
    %v998 = vmul.f32 %v973, %v997
    %v999 = vmin.f32 %v998, 1.0
    %v1000 = vmax.f32 %v999, -1.0
    %v1001 = vmul.f32 %v960, %v960
    %v1002 = vmin.f32 16.0, %v1001
    %v1003 = vmul.f32 %v1002, 2.1237322e-06
    %v1004 = vadd.f32 %v1003, 0.00028619796
    %v1005 = vmul.f32 %v1002, %v1004
    %v1006 = vadd.f32 %v1005, 0.0036580483
    %v1007 = vmul.f32 %v1002, %v1006
    %v1008 = vadd.f32 %v1007, 0.05243302
    %v1009 = vmul.f32 %v1002, %v1008
    %v1010 = vadd.f32 %v1009, 0.18741608
    %v1011 = vmul.f32 %v1002, %v1010
    %v1012 = vadd.f32 %v1011, 1.1283791
    %v1013 = vmul.f32 %v960, %v1012
    %v1014 = vmul.f32 %v1002, 3.8918573e-05
    %v1015 = vadd.f32 %v1014, 0.001143296
    %v1016 = vmul.f32 %v1002, %v1015
    %v1017 = vadd.f32 %v1016, 0.014752088
    %v1018 = vmul.f32 %v1002, %v1017
    %v1019 = vadd.f32 %v1018, 0.112945676
    %v1020 = vmul.f32 %v1002, %v1019
    %v1021 = vadd.f32 %v1020, 0.4994258
    %v1022 = vmul.f32 %v1002, %v1021
    %v1023 = vadd.f32 %v1022, 1.0
    %v1024 = vrcp.pop %v1023
    %v1025 = vmul.f32 %v1023, %v1024
    %v1026 = vsub.f32 1.0, %v1025
    %v1027 = vmul.f32 %v1024, %v1026
    %v1028 = vadd.f32 %v1024, %v1027
    %vm1029 = vweird.f32 %v1023
    %vm1030 = vweird.f32 %v1024
    %vm1031 = vmor %vm1029, %vm1030
    %v1032 = vsel %vm1031, %v1024, %v1028
    %v1033 = vand.u32 2147483647, %v1023
    %vm1034 = vcmp.eq.f32.partialorder %v1033, 8.507059e+37
    %v1035 = vand.u32 %v1023, 2147483648
    %v1036 = vor.u32 1.1754944e-38, %v1035
    %v1037 = vsel %vm1034, %v1036, %v1032
    %v1038 = vmul.f32 %v1013, %v1037
    %v1039 = vmin.f32 %v1038, 1.0
    %v1040 = vmax.f32 %v1039, -1.0
    %v1041 = vadd.f32 %v1000, 1.0
    %v1042 = vadd.f32 %v1040, 1.0
    %v1043 = vmul.f32 %v957, %v1041
    %v1044 = vmul.f32 %v958, %v1042
    %1045 = vmatpush.msra.mxu0 %v893
    %1046 = vmatpush.msra.mxu0 %v892
    %1047 = vmatpush.msra.mxu0 %v891
    %1048 = vmatpush.msra.mxu0 %v890
    %1049 = vmatpush.msra.mxu0 %v889
    %1050 = vmatpush.msra.mxu0 %v888
    %1051 = vmatpush.msra.mxu0 %v887
    %1052 = vmatpush.msra.mxu0 %v886
    %1053 = vmatpush.msra.mxu0 %v885
    %1054 = vmatpush.msra.mxu0 %v884
    %1055 = vmatpush.msra.mxu0 %v883
    %1056 = vmatpush.msra.mxu0 %v882
    %1057 = vmatpush.msra.mxu0 %v881
    %1058 = vmatpush.msra.mxu0 %v880
    %1059 = vmatpush.msra.mxu0 %v879
    %1060 = vmatpush.msra.mxu0 %v878
    %1061 = vmatmul.f32.gmra.mxu0 %v1043
    %v1062 = vpop.f32.mrf.mxu0
    %v1063 = vadd.f32 %v897, %v1062
    %1064 = vmatmul.f32.gmra.mxu0 %v1044
    %v1065 = vpop.f32.mrf.mxu0
    %v1066 = vadd.f32 %v897, %v1065
    %1067 = vdwg.mxu0
    %v1069 = vrot.slane %v921, 1
    %v1070 = vperm.slane %v921, 0
    %v1071 = vperm.slane %v1069, 0
    %v1074 = vmul.f32 %v1063, %v1070
    %v1075 = vmul.f32 %v1066, %v1071
    %v1076 = vsel %vm52, %v1074, 0.0
    %1077 = vadd.xlane.f32.xlu0 %v1076
    %v1078 = vpop.xlane.xlu0 %1077
    %v1079 = vsel %vm52, %v1075, 0.0
    %1080 = vadd.xlane.f32.xlu0 %v1079
    %v1081 = vpop.xlane.xlu0 %1080
    %v1082 = vxor.u32 %v1078, 2147483648
    %v1083 = vxor.u32 %v1081, 2147483648
    %v1084 = vmul.f32 %v1082, 1.442695
    %v1085 = vpow.pop %v1084
    %v1086 = vmul.f32 %v1083, 1.442695
    %v1087 = vpow.pop %v1086
    %v1088 = vadd.f32 %v1085, 1.0
    %v1089 = vadd.f32 %v1087, 1.0
    %v1090 = vrcp.pop %v1088
    %v1091 = vmul.f32 %v1088, %v1090
    %v1092 = vsub.f32 1.0, %v1091
    %v1093 = vmul.f32 %v1090, %v1092
    %v1094 = vadd.f32 %v1090, %v1093
    %vm1095 = vweird.f32 %v1088
    %vm1096 = vweird.f32 %v1090
    %vm1097 = vmor %vm1095, %vm1096
    %v1098 = vsel %vm1097, %v1090, %v1094
    %v1099 = vand.u32 2147483647, %v1088
    %vm1100 = vcmp.eq.f32.partialorder %v1099, 8.507059e+37
    %v1101 = vand.u32 %v1088, 2147483648
    %v1102 = vor.u32 1.1754944e-38, %v1101
    %v1103 = vsel %vm1100, %v1102, %v1098
    %v1104 = vmul.f32 1.0, %v1103
    %v1105 = vrcp.pop %v1089
    %v1106 = vmul.f32 %v1089, %v1105
    %v1107 = vsub.f32 1.0, %v1106
    %v1108 = vmul.f32 %v1105, %v1107
    %v1109 = vadd.f32 %v1105, %v1108
    %vm1110 = vweird.f32 %v1089
    %vm1111 = vweird.f32 %v1105
    %vm1112 = vmor %vm1110, %vm1111
    %v1113 = vsel %vm1112, %v1105, %v1109
    %v1114 = vand.u32 2147483647, %v1089
    %vm1115 = vcmp.eq.f32.partialorder %v1114, 8.507059e+37
    %v1116 = vand.u32 %v1089, 2147483648
    %v1117 = vor.u32 1.1754944e-38, %v1116
    %v1118 = vsel %vm1115, %v1117, %v1113
    %v1119 = vmul.f32 1.0, %v1118
    %v1120 = vmul.f32 %v1104, %v923
    %v1121 = vmul.f32 %v1119, %v924
    %1122 = vst.msk [vmem:[#allocation2 + $0x8] sm:$0xff] %vm52, %v1120
    %1123 = vst.msk [vmem:[#allocation2 + $0x20] sm:$0xff] %vm52, %v1121
    %v1124 = vld [vmem:[%s8 + $0x10] sm:$0xff]
    %v1125 = vld [vmem:[%s8 + $0x28] sm:$0xff]
    %v1126 = vld [vmem:[%s8 + $0x40] sm:$0xff]
    %v1127 = vld [vmem:[%s8 + $0x58] sm:$0xff]
    %v1128 = vld [vmem:[%s9 + $0x2] sm:$0x1]
    %s1129 = scalar_lea.vmem %s10, 256
    %v1130 = vld [vmem:[%s1129] sm:$0xff]
    %v1131 = vld [vmem:[%s1129 + $0x8] sm:$0xff]
    %v1132 = vld [vmem:[%s1129 + $0x10] sm:$0xff]
    %v1133 = vld [vmem:[%s1129 + $0x18] sm:$0xff]
    %v1134 = vld [vmem:[%s1129 + $0x20] sm:$0xff]
    %v1135 = vld [vmem:[%s1129 + $0x28] sm:$0xff]
    %v1136 = vld [vmem:[%s1129 + $0x30] sm:$0xff]
    %v1137 = vld [vmem:[%s1129 + $0x38] sm:$0xff]
    %v1138 = vld [vmem:[%s1129 + $0x40] sm:$0xff]
    %v1139 = vld [vmem:[%s1129 + $0x48] sm:$0xff]
    %v1140 = vld [vmem:[%s1129 + $0x50] sm:$0xff]
    %v1141 = vld [vmem:[%s1129 + $0x58] sm:$0xff]
    %v1142 = vld [vmem:[%s1129 + $0x60] sm:$0xff]
    %v1143 = vld [vmem:[%s1129 + $0x68] sm:$0xff]
    %v1144 = vld [vmem:[%s1129 + $0x70] sm:$0xff]
    %v1145 = vld [vmem:[%s1129 + $0x78] sm:$0xff]
    %s1146 = scalar_lea.vmem %s11, 2
    %v1147 = vld [vmem:[%s1146] sm:$0x1]
    %v1149 = vperm.slane %v1147, 0
    %v1153 = vsel %vm648, %v620, %v617
    %1155 = vmatpush.msra.mxu0 %v1145
    %1156 = vmatpush.msra.mxu0 %v1144
    %1157 = vmatpush.msra.mxu0 %v1143
    %1158 = vmatpush.msra.mxu0 %v1142
    %1159 = vmatpush.msra.mxu0 %v1141
    %1160 = vmatpush.msra.mxu0 %v1140
    %1161 = vmatpush.msra.mxu0 %v1139
    %1162 = vmatpush.msra.mxu0 %v1138
    %1163 = vmatpush.msra.mxu0 %v1137
    %1164 = vmatpush.msra.mxu0 %v1136
    %1165 = vmatpush.msra.mxu0 %v1135
    %1166 = vmatpush.msra.mxu0 %v1134
    %1167 = vmatpush.msra.mxu0 %v1133
    %1168 = vmatpush.msra.mxu0 %v1132
    %1169 = vmatpush.msra.mxu0 %v1131
    %1170 = vmatpush.msra.mxu0 %v1130
    %1171 = vmatmul.f32.gmra.mxu0 %v1153
    %v1172 = vpop.f32.mrf.mxu0
    %v1173 = vadd.f32 %v1149, %v1172
    %1174 = vdwg.mxu0
    %v1175 = vld [vmem:[%s3] sm:$0xff]
    %v1176 = vld [vmem:[%s3 + $0x8] sm:$0xff]
    %v1178 = vperm.slane %v1128, 0
    %v1181 = vsel %vm52, %v1175, 0
    %v1184 = vsel %vm52, %v1176, 0
    %1186 = vmatpush.msra.mxu0 0.0
    %1187 = vmatpush.msra.mxu0 0.0
    %1188 = vmatpush.msra.mxu0 0.0
    %1189 = vmatpush.msra.mxu0 0.0
    %1190 = vmatpush.msra.mxu0 0.0
    %1191 = vmatpush.msra.mxu0 0.0
    %1192 = vmatpush.msra.mxu0 0.0
    %1193 = vmatpush.msra.mxu0 0.0
    %1194 = vmatpush.msra.mxu0 0.0
    %1195 = vmatpush.msra.mxu0 0.0
    %1196 = vmatpush.msra.mxu0 0.0
    %1197 = vmatpush.msra.mxu0 0.0
    %1198 = vmatpush.msra.mxu0 %v1127
    %1199 = vmatpush.msra.mxu0 %v1126
    %1200 = vmatpush.msra.mxu0 %v1125
    %1201 = vmatpush.msra.mxu0 %v1124
    %1202 = vmatmul.f32.gmra.mxu0 %v1181
    %v1203 = vpop.f32.mrf.mxu0
    %v1204 = vadd.f32 %v1178, %v1203
    %1205 = vmatmul.f32.gmra.mxu0 %v1184
    %v1206 = vpop.f32.mrf.mxu0
    %v1207 = vadd.f32 %v1178, %v1206
    %1208 = vdwg.mxu0
    %v1209 = vmul.f32 %v1204, 0.5
    %v1210 = vmul.f32 %v1207, 0.5
    %v1211 = vmul.f32 %v1204, 0.70710677
    %v1212 = vmul.f32 %v1207, 0.70710677
    %v1213 = vmul.f32 %v1211, %v1211
    %v1214 = vmin.f32 16.0, %v1213
    %v1215 = vmul.f32 %v1214, 2.1237322e-06
    %v1216 = vadd.f32 %v1215, 0.00028619796
    %v1217 = vmul.f32 %v1214, %v1216
    %v1218 = vadd.f32 %v1217, 0.0036580483
    %v1219 = vmul.f32 %v1214, %v1218
    %v1220 = vadd.f32 %v1219, 0.05243302
    %v1221 = vmul.f32 %v1214, %v1220
    %v1222 = vadd.f32 %v1221, 0.18741608
    %v1223 = vmul.f32 %v1214, %v1222
    %v1224 = vadd.f32 %v1223, 1.1283791
    %v1225 = vmul.f32 %v1211, %v1224
    %v1226 = vmul.f32 %v1214, 3.8918573e-05
    %v1227 = vadd.f32 %v1226, 0.001143296
    %v1228 = vmul.f32 %v1214, %v1227
    %v1229 = vadd.f32 %v1228, 0.014752088
    %v1230 = vmul.f32 %v1214, %v1229
    %v1231 = vadd.f32 %v1230, 0.112945676
    %v1232 = vmul.f32 %v1214, %v1231
    %v1233 = vadd.f32 %v1232, 0.4994258
    %v1234 = vmul.f32 %v1214, %v1233
    %v1235 = vadd.f32 %v1234, 1.0
    %v1236 = vrcp.pop %v1235
    %v1237 = vmul.f32 %v1235, %v1236
    %v1238 = vsub.f32 1.0, %v1237
    %v1239 = vmul.f32 %v1236, %v1238
    %v1240 = vadd.f32 %v1236, %v1239
    %vm1241 = vweird.f32 %v1235
    %vm1242 = vweird.f32 %v1236
    %vm1243 = vmor %vm1241, %vm1242
    %v1244 = vsel %vm1243, %v1236, %v1240
    %v1245 = vand.u32 2147483647, %v1235
    %vm1246 = vcmp.eq.f32.partialorder %v1245, 8.507059e+37
    %v1247 = vand.u32 %v1235, 2147483648
    %v1248 = vor.u32 1.1754944e-38, %v1247
    %v1249 = vsel %vm1246, %v1248, %v1244
    %v1250 = vmul.f32 %v1225, %v1249
    %v1251 = vmin.f32 %v1250, 1.0
    %v1252 = vmax.f32 %v1251, -1.0
    %v1253 = vmul.f32 %v1212, %v1212
    %v1254 = vmin.f32 16.0, %v1253
    %v1255 = vmul.f32 %v1254, 2.1237322e-06
    %v1256 = vadd.f32 %v1255, 0.00028619796
    %v1257 = vmul.f32 %v1254, %v1256
    %v1258 = vadd.f32 %v1257, 0.0036580483
    %v1259 = vmul.f32 %v1254, %v1258
    %v1260 = vadd.f32 %v1259, 0.05243302
    %v1261 = vmul.f32 %v1254, %v1260
    %v1262 = vadd.f32 %v1261, 0.18741608
    %v1263 = vmul.f32 %v1254, %v1262
    %v1264 = vadd.f32 %v1263, 1.1283791
    %v1265 = vmul.f32 %v1212, %v1264
    %v1266 = vmul.f32 %v1254, 3.8918573e-05
    %v1267 = vadd.f32 %v1266, 0.001143296
    %v1268 = vmul.f32 %v1254, %v1267
    %v1269 = vadd.f32 %v1268, 0.014752088
    %v1270 = vmul.f32 %v1254, %v1269
    %v1271 = vadd.f32 %v1270, 0.112945676
    %v1272 = vmul.f32 %v1254, %v1271
    %v1273 = vadd.f32 %v1272, 0.4994258
    %v1274 = vmul.f32 %v1254, %v1273
    %v1275 = vadd.f32 %v1274, 1.0
    %v1276 = vrcp.pop %v1275
    %v1277 = vmul.f32 %v1275, %v1276
    %v1278 = vsub.f32 1.0, %v1277
    %v1279 = vmul.f32 %v1276, %v1278
    %v1280 = vadd.f32 %v1276, %v1279
    %vm1281 = vweird.f32 %v1275
    %vm1282 = vweird.f32 %v1276
    %vm1283 = vmor %vm1281, %vm1282
    %v1284 = vsel %vm1283, %v1276, %v1280
    %v1285 = vand.u32 2147483647, %v1275
    %vm1286 = vcmp.eq.f32.partialorder %v1285, 8.507059e+37
    %v1287 = vand.u32 %v1275, 2147483648
    %v1288 = vor.u32 1.1754944e-38, %v1287
    %v1289 = vsel %vm1286, %v1288, %v1284
    %v1290 = vmul.f32 %v1265, %v1289
    %v1291 = vmin.f32 %v1290, 1.0
    %v1292 = vmax.f32 %v1291, -1.0
    %v1293 = vadd.f32 %v1252, 1.0
    %v1294 = vadd.f32 %v1292, 1.0
    %v1295 = vmul.f32 %v1209, %v1293
    %v1296 = vmul.f32 %v1210, %v1294
    %1297 = vmatpush.msra.mxu0 %v1145
    %1298 = vmatpush.msra.mxu0 %v1144
    %1299 = vmatpush.msra.mxu0 %v1143
    %1300 = vmatpush.msra.mxu0 %v1142
    %1301 = vmatpush.msra.mxu0 %v1141
    %1302 = vmatpush.msra.mxu0 %v1140
    %1303 = vmatpush.msra.mxu0 %v1139
    %1304 = vmatpush.msra.mxu0 %v1138
    %1305 = vmatpush.msra.mxu0 %v1137
    %1306 = vmatpush.msra.mxu0 %v1136
    %1307 = vmatpush.msra.mxu0 %v1135
    %1308 = vmatpush.msra.mxu0 %v1134
    %1309 = vmatpush.msra.mxu0 %v1133
    %1310 = vmatpush.msra.mxu0 %v1132
    %1311 = vmatpush.msra.mxu0 %v1131
    %1312 = vmatpush.msra.mxu0 %v1130
    %1313 = vmatmul.f32.gmra.mxu0 %v1295
    %v1314 = vpop.f32.mrf.mxu0
    %v1315 = vadd.f32 %v1149, %v1314
    %1316 = vmatmul.f32.gmra.mxu0 %v1296
    %v1317 = vpop.f32.mrf.mxu0
    %v1318 = vadd.f32 %v1149, %v1317
    %1319 = vdwg.mxu0
    %v1321 = vrot.slane %v1173, 1
    %v1322 = vperm.slane %v1173, 0
    %v1323 = vperm.slane %v1321, 0
    %v1326 = vmul.f32 %v1315, %v1322
    %v1327 = vmul.f32 %v1318, %v1323
    %v1328 = vsel %vm52, %v1326, 0.0
    %1329 = vadd.xlane.f32.xlu0 %v1328
    %v1330 = vpop.xlane.xlu0 %1329
    %v1331 = vsel %vm52, %v1327, 0.0
    %1332 = vadd.xlane.f32.xlu0 %v1331
    %v1333 = vpop.xlane.xlu0 %1332
    %v1334 = vxor.u32 %v1330, 2147483648
    %v1335 = vxor.u32 %v1333, 2147483648
    %v1336 = vmul.f32 %v1334, 1.442695
    %v1337 = vpow.pop %v1336
    %v1338 = vmul.f32 %v1335, 1.442695
    %v1339 = vpow.pop %v1338
    %v1340 = vadd.f32 %v1337, 1.0
    %v1341 = vadd.f32 %v1339, 1.0
    %v1342 = vrcp.pop %v1340
    %v1343 = vmul.f32 %v1340, %v1342
    %v1344 = vsub.f32 1.0, %v1343
    %v1345 = vmul.f32 %v1342, %v1344
    %v1346 = vadd.f32 %v1342, %v1345
    %vm1347 = vweird.f32 %v1340
    %vm1348 = vweird.f32 %v1342
    %vm1349 = vmor %vm1347, %vm1348
    %v1350 = vsel %vm1349, %v1342, %v1346
    %v1351 = vand.u32 2147483647, %v1340
    %vm1352 = vcmp.eq.f32.partialorder %v1351, 8.507059e+37
    %v1353 = vand.u32 %v1340, 2147483648
    %v1354 = vor.u32 1.1754944e-38, %v1353
    %v1355 = vsel %vm1352, %v1354, %v1350
    %v1356 = vmul.f32 1.0, %v1355
    %v1357 = vrcp.pop %v1341
    %v1358 = vmul.f32 %v1341, %v1357
    %v1359 = vsub.f32 1.0, %v1358
    %v1360 = vmul.f32 %v1357, %v1359
    %v1361 = vadd.f32 %v1357, %v1360
    %vm1362 = vweird.f32 %v1341
    %vm1363 = vweird.f32 %v1357
    %vm1364 = vmor %vm1362, %vm1363
    %v1365 = vsel %vm1364, %v1357, %v1361
    %v1366 = vand.u32 2147483647, %v1341
    %vm1367 = vcmp.eq.f32.partialorder %v1366, 8.507059e+37
    %v1368 = vand.u32 %v1341, 2147483648
    %v1369 = vor.u32 1.1754944e-38, %v1368
    %v1370 = vsel %vm1367, %v1369, %v1365
    %v1371 = vmul.f32 1.0, %v1370
    %v1372 = vmul.f32 %v1356, %v1175
    %v1373 = vmul.f32 %v1371, %v1176
    %1374 = vst.msk [vmem:[#allocation2 + $0x10] sm:$0xff] %vm52, %v1372
    %1375 = vst.msk [vmem:[#allocation2 + $0x28] sm:$0xff] %vm52, %v1373
    // Predicated region
    $region50: #{gating_forward.1} parent=1 // pred_check
      _
    $region51: #{gating_forward.1} parent=1 // pred_check_branch
      %1377 = sbr.rel (0) target = $region53
    $region52: #{gating_forward.1} parent=1 // pred_region
      %1379 = vsyncadd [#allocation3], 0
      %s1380 = sshll.u32 [#allocation2], 4
      %s1381 = int_to_ptr.vmem [resolvable:$true] %s1380
      %s1382 = sshll.u32 %s12, 4
      %s1383 = int_to_ptr.hbm [resolvable:$true] %s1382
      %1388 = dma.vmem_to_hbm [thread:$0]  %s1381, 768, %s1383, [#allocation3], 128, 128, 8
    $region53: #{gating_forward.1} parent=1 // pred_fallthru
      _
    // Predicated region
    $region54: #{gating_forward.1} parent=1 // pred_check
      _
    $region55: #{gating_forward.1} parent=1 // pred_check_branch
      %1390 = sbr.rel (0) target = $region57
    $region56: #{gating_forward.1} parent=1 // pred_region
      %1392 = dma.done [#allocation3], 768
    $region57: #{gating_forward.1} parent=1 // pred_fallthru
      _
    %1393 = vsyncpa [#allocation3], 1

</llo_original>
